<compile_context>
chip_gen: v6e
topology: v6e:2x2x1
jax: 0.10.0
libtpu: 0.0.40
codegen_flags: <defaults>
</compile_context>

<pallas_src>
import functools

import jax
import jax.numpy as jnp
from jax import lax
from jax.experimental import pallas as pl
from jax.experimental.pallas import tpu as pltpu


INPUT_DIM = 64
HIDDEN_DIMS = (1000, 32, 1000)

# Lane-aligned (multiple-of-128) padded dimensions used inside the kernel.
P_IN = 128    # input   64   -> 128
P_H0 = 1024   # hidden  1000 -> 1024
P_H1 = 128    # code    32   -> 128
P_H2 = 1024   # hidden  1000 -> 1024
P_OUT = 128   # output  64   -> 128

DEFAULT_BLOCK_M = 1024   # batch tile (review: 1024 is the safe sweet spot across gens)
MAX_CHUNK_M = 256        # rows per independent sub-chunk inside a tile
VMEM_LIMIT_BYTES = 48 * 1024 * 1024


def _round_up(n, m):
    return ((n + m - 1) // m) * m


def _pick_chunk(tm):
    """Largest sub-chunk size <= MAX_CHUNK_M that divides tm (tm is a multiple of 16)."""
    for c in (256, 128, 64, 32, 16):
        if c <= MAX_CHUNK_M and tm % c == 0:
            return c
    return tm


def _sae_kernel(x_ref,
                w1_ref, b1_ref,
                w2_ref, b2_ref,
                w3_ref, b3_ref,
                w4_ref, b4_ref,
                dec_ref, enc_ref,
                *, chunk, n_chunks):
    """One batch tile, processed as `n_chunks` independent row sub-chunks.

    Each sub-chunk runs the full 4-layer chain (4 MXU matmuls, bf16 operands with f32
    accumulation, bias/ReLU/sigmoid in f32).  Sub-chunks are independent, so the LLO
    scheduler can overlap chunk k+1's matmuls with chunk k's VPU/EUP/store epilogue.

    Weights/biases are VMEM-resident across the whole grid (constant index_map) and are
    loaded once per tile, outside the sub-chunk loop.
    """
    bf16 = jnp.bfloat16

    # Hoisted: one load per tile (JAX does not CSE these if left inside the loop).
    w1 = w1_ref[...]
    b1 = b1_ref[...]
    w2 = w2_ref[...]
    b2 = b2_ref[...]
    w3 = w3_ref[...]
    b3 = b3_ref[...]
    w4 = w4_ref[...]
    b4 = b4_ref[...]

    def body(c, carry):
        row = pl.multiple_of(c * chunk, chunk)
        x = x_ref[pl.ds(row, chunk), :]                       # (chunk, 128) bf16

        # encoder layer 1: Linear(64 -> 1000) + ReLU  (Dropout == identity at eval)
        # Fused bias+ReLU+cast: only the bf16 (chunk, 1024) intermediate stays live.
        h1 = jnp.maximum(
            jnp.dot(x, w1, preferred_element_type=jnp.float32) + b1, 0.0
        ).astype(bf16)

        # encoder layer 2: Linear(1000 -> 32) + ReLU  -> encoded output (kept f32)
        enc = jnp.maximum(
            jnp.dot(h1, w2, preferred_element_type=jnp.float32) + b2, 0.0)

        # decoder layer 1: Linear(32 -> 1000) + ReLU
        h3 = jnp.maximum(
            jnp.dot(enc.astype(bf16), w3, preferred_element_type=jnp.float32) + b3, 0.0
        ).astype(bf16)

        # decoder layer 2: Linear(1000 -> 64) + Sigmoid
        dec = jax.nn.sigmoid(
            jnp.dot(h3, w4, preferred_element_type=jnp.float32) + b4)

        # Lane-dense (chunk, 128) stores.
        dec_ref[pl.ds(row, chunk), :] = dec.astype(dec_ref.dtype)
        enc_ref[pl.ds(row, chunk), :] = enc.astype(enc_ref.dtype)
        return carry

    lax.fori_loop(0, n_chunks, body, 0, unroll=True)


def sae_forward(x, packed, *, block_m=DEFAULT_BLOCK_M):
    """x: (batch, INPUT_DIM) f32. packed: zero-padded bf16 weights / f32 biases.

    Returns (decoded (batch, 64) f32, encoded (batch, 32) f32).
    """
    batch = x.shape[0]

    # Tile size: multiple of 16 (bf16 sublane packing), capped at block_m.
    tm_full = max(16, _round_up(batch, 16))
    tm = min(block_m, tm_full)
    # Guarantee >= 2 grid tiles when the batch allows, so ("parallel",) actually
    # shards the batch across both v7x TensorCores instead of leaving one idle.
    if tm >= tm_full and batch > 16:
        tm = max(16, _round_up((batch + 1) // 2, 16))
    batch_pad = _round_up(batch, tm)

    chunk = _pick_chunk(tm)
    n_chunks = tm // chunk

    # Zero-pad batch to a multiple of the tile and features to 128 lanes; cast to bf16
    # for the MXU (f32 accumulation is kept inside the kernel).  Zero rows/cols are
    # mathematically inert and padded output columns are sliced off below.
    x_pad = jnp.zeros((batch_pad, P_IN), jnp.bfloat16)
    x_pad = x_pad.at[:batch, :INPUT_DIM].set(x.astype(jnp.bfloat16))

    def tile(shape):
        return pl.BlockSpec(shape, lambda i: (i, 0))

    def resident(shape):
        return pl.BlockSpec(shape, lambda i: (0, 0))

    kernel = functools.partial(_sae_kernel, chunk=chunk, n_chunks=n_chunks)

    dec_pad, enc_pad = pl.pallas_call(
        kernel,
        out_shape=(
            jax.ShapeDtypeStruct((batch_pad, P_OUT), jnp.float32),  # decoded (padded)
            jax.ShapeDtypeStruct((batch_pad, P_H1), jnp.float32),   # encoded (padded)
        ),
        grid=(batch_pad // tm,),
        in_specs=[
            tile((tm, P_IN)),
            resident((P_IN, P_H0)), resident((1, P_H0)),
            resident((P_H0, P_H1)), resident((1, P_H1)),
            resident((P_H1, P_H2)), resident((1, P_H2)),
            resident((P_H2, P_OUT)), resident((1, P_OUT)),
        ],
        out_specs=(tile((tm, P_OUT)), tile((tm, P_H1))),
        compiler_params=pltpu.CompilerParams(
            dimension_semantics=("parallel",),       # shard batch tiles across TCs
            vmem_limit_bytes=VMEM_LIMIT_BYTES,       # lift default scoped-VMEM limit
        ),
    )(
        x_pad,
        packed["w1"], packed["b1"],
        packed["w2"], packed["b2"],
        packed["w3"], packed["b3"],
        packed["w4"], packed["b4"],
    )

    decoded = dec_pad[:batch, :INPUT_DIM]
    encoded = enc_pad[:batch, :HIDDEN_DIMS[1]]
    return decoded, encoded


def init_params(key):
    """Deterministic init mimicking PyTorch nn.Linear default:
    weight, bias ~ U(-1/sqrt(fan_in), 1/sqrt(fan_in)).
    Stored already transposed to (in, out) f32 (so y = x @ W + b), biases (out,) f32."""
    dims = [
        (INPUT_DIM, HIDDEN_DIMS[0]),       # encoder linear 1
        (HIDDEN_DIMS[0], HIDDEN_DIMS[1]),  # encoder linear 2
        (HIDDEN_DIMS[1], HIDDEN_DIMS[2]),  # decoder linear 1
        (HIDDEN_DIMS[2], INPUT_DIM),       # decoder linear 2
    ]
    params = {}
    for idx, (fan_in, fan_out) in enumerate(dims, start=1):
        key, kw, kb = jax.random.split(key, 3)
        bound = 1.0 / (fan_in ** 0.5)
        params[f"w{idx}"] = jax.random.uniform(
            kw, (fan_in, fan_out), jnp.float32, minval=-bound, maxval=bound)
        params[f"b{idx}"] = jax.random.uniform(
            kb, (fan_out,), jnp.float32, minval=-bound, maxval=bound)
    return params


def pack_params(params):
    """Zero-pad params to lane-aligned kernel shapes; weights -> bf16, biases -> f32 (1, out)."""
    def pad_w(w, rows, cols):
        wp = jnp.zeros((rows, cols), jnp.float32)
        wp = wp.at[:w.shape[0], :w.shape[1]].set(w)
        return wp.astype(jnp.bfloat16)

    def pad_b(b, cols):
        bp = jnp.zeros((1, cols), jnp.float32)
        return bp.at[0, :b.shape[0]].set(b)

    return {
        "w1": pad_w(params["w1"], P_IN, P_H0), "b1": pad_b(params["b1"], P_H0),
        "w2": pad_w(params["w2"], P_H0, P_H1), "b2": pad_b(params["b2"], P_H1),
        "w3": pad_w(params["w3"], P_H1, P_H2), "b3": pad_b(params["b3"], P_H2),
        "w4": pad_w(params["w4"], P_H2, P_OUT), "b4": pad_b(params["b4"], P_OUT),
    }


if __name__ == "__main__":
    key = jax.random.PRNGKey(0)
    key, kx = jax.random.split(key)

    batch = 8
    x = jax.random.uniform(kx, (batch, INPUT_DIM), jnp.float32)

    params = init_params(key)
    packed = pack_params(params)

    fwd = jax.jit(sae_forward)
    decoded, encoded = fwd(x, packed)
    jax.block_until_ready((decoded, encoded))

    # Pure-JAX f32 reference (eval-mode dropout == identity).
    def ref_forward(x, p):
        h1 = jnp.maximum(x @ p["w1"] + p["b1"], 0.0)
        enc = jnp.maximum(h1 @ p["w2"] + p["b2"], 0.0)
        h3 = jnp.maximum(enc @ p["w3"] + p["b3"], 0.0)
        dec = jax.nn.sigmoid(h3 @ p["w4"] + p["b4"])
        return dec, enc

    dec_ref, enc_ref = ref_forward(x, params)
    assert decoded.shape == (batch, INPUT_DIM)
    assert encoded.shape == (batch, HIDDEN_DIMS[1])
    # bf16 MXU operands with f32 accumulation vs a pure-f32 reference -> loose tolerance.
    assert jnp.allclose(decoded, dec_ref, atol=5e-2, rtol=5e-2), \
        float(jnp.max(jnp.abs(decoded - dec_ref)))
    assert jnp.allclose(encoded, enc_ref, atol=5e-2, rtol=5e-2), \
        float(jnp.max(jnp.abs(encoded - enc_ref)))

    print("KERNEL_OK")
</pallas_src>

<mosaic_0001>
module attributes {stable_mosaic.version = 11 : i64} {
  func.func @_sae_kernel(%arg0: i32, %arg1: memref<16x128xbf16, #tpu.memory_space<vmem>>, %arg2: memref<128x1024xbf16, #tpu.memory_space<vmem>>, %arg3: memref<1x1024xf32, #tpu.memory_space<vmem>>, %arg4: memref<1024x128xbf16, #tpu.memory_space<vmem>>, %arg5: memref<1x128xf32, #tpu.memory_space<vmem>>, %arg6: memref<128x1024xbf16, #tpu.memory_space<vmem>>, %arg7: memref<1x1024xf32, #tpu.memory_space<vmem>>, %arg8: memref<1024x128xbf16, #tpu.memory_space<vmem>>, %arg9: memref<1x128xf32, #tpu.memory_space<vmem>>, %arg10: memref<16x128xf32, #tpu.memory_space<vmem>>, %arg11: memref<16x128xf32, #tpu.memory_space<vmem>>) attributes {dimension_semantics = [#tpu.dimension_semantics<parallel>], iteration_bounds = array<i64: 1>, scalar_prefetch = 0 : i64, scratch_operands = 0 : i64, tpu.core_type = #tpu.core_type<tc>, window_params = [{transform_indices = @transform_0, window_bounds = array<i64: 16, 128>}, {pipeline_mode = #tpu.pipeline_mode<synchronous>, transform_indices = @transform_1, window_bounds = array<i64: 128, 1024>}, {pipeline_mode = #tpu.pipeline_mode<synchronous>, transform_indices = @transform_2, window_bounds = array<i64: 1, 1024>}, {pipeline_mode = #tpu.pipeline_mode<synchronous>, transform_indices = @transform_3, window_bounds = array<i64: 1024, 128>}, {pipeline_mode = #tpu.pipeline_mode<synchronous>, transform_indices = @transform_4, window_bounds = array<i64: 1, 128>}, {pipeline_mode = #tpu.pipeline_mode<synchronous>, transform_indices = @transform_5, window_bounds = array<i64: 128, 1024>}, {pipeline_mode = #tpu.pipeline_mode<synchronous>, transform_indices = @transform_6, window_bounds = array<i64: 1, 1024>}, {pipeline_mode = #tpu.pipeline_mode<synchronous>, transform_indices = @transform_7, window_bounds = array<i64: 1024, 128>}, {pipeline_mode = #tpu.pipeline_mode<synchronous>, transform_indices = @transform_8, window_bounds = array<i64: 1, 128>}, {transform_indices = @transform_9, window_bounds = array<i64: 16, 128>}, {transform_indices = @transform_10, window_bounds = array<i64: 16, 128>}]} {
    %c0 = arith.constant 0 : index
    %c0_0 = arith.constant 0 : index
    %0 = vector.load %arg2[%c0, %c0_0] : memref<128x1024xbf16, #tpu.memory_space<vmem>>, vector<128x1024xbf16>
    %c0_1 = arith.constant 0 : index
    %c0_2 = arith.constant 0 : index
    %1 = vector.load %arg3[%c0_1, %c0_2] : memref<1x1024xf32, #tpu.memory_space<vmem>>, vector<1x1024xf32>
    %c0_3 = arith.constant 0 : index
    %c0_4 = arith.constant 0 : index
    %2 = vector.load %arg4[%c0_3, %c0_4] : memref<1024x128xbf16, #tpu.memory_space<vmem>>, vector<1024x128xbf16>
    %c0_5 = arith.constant 0 : index
    %c0_6 = arith.constant 0 : index
    %3 = vector.load %arg5[%c0_5, %c0_6] : memref<1x128xf32, #tpu.memory_space<vmem>>, vector<1x128xf32>
    %c0_7 = arith.constant 0 : index
    %c0_8 = arith.constant 0 : index
    %4 = vector.load %arg6[%c0_7, %c0_8] : memref<128x1024xbf16, #tpu.memory_space<vmem>>, vector<128x1024xbf16>
    %c0_9 = arith.constant 0 : index
    %c0_10 = arith.constant 0 : index
    %5 = vector.load %arg7[%c0_9, %c0_10] : memref<1x1024xf32, #tpu.memory_space<vmem>>, vector<1x1024xf32>
    %c0_11 = arith.constant 0 : index
    %c0_12 = arith.constant 0 : index
    %6 = vector.load %arg8[%c0_11, %c0_12] : memref<1024x128xbf16, #tpu.memory_space<vmem>>, vector<1024x128xbf16>
    %c0_13 = arith.constant 0 : index
    %c0_14 = arith.constant 0 : index
    %7 = vector.load %arg9[%c0_13, %c0_14] : memref<1x128xf32, #tpu.memory_space<vmem>>, vector<1x128xf32>
    %c0_i32 = arith.constant 0 : i32
    %c16_i32 = arith.constant 16 : i32
    %8 = arith.muli %c0_i32, %c16_i32 : i32
    %9 = tpu.assume_multiple %8, 16 : i32
    %10 = arith.index_cast %9 : i32 to index
    %c0_15 = arith.constant 0 : index
    %11 = vector.load %arg1[%10, %c0_15] : memref<16x128xbf16, #tpu.memory_space<vmem>>, vector<16x128xbf16>
    %cst = arith.constant dense<0.000000e+00> : vector<16x1024xf32>
    %12 = tpu.matmul %11, %0, %cst {dimension_numbers = #tpu.dot_dimension_numbers<[1], [0], [0], [1], [0, 0, 1, 1], [], []>} : vector<16x128xbf16>, vector<128x1024xbf16>, vector<16x1024xf32> -> vector<16x1024xf32>
    %13 = vector.broadcast %1 : vector<1x1024xf32> to vector<16x1024xf32>
    %14 = arith.addf %12, %13 : vector<16x1024xf32>
    %cst_16 = arith.constant 0.000000e+00 : f32
    %15 = vector.broadcast %cst_16 : f32 to vector<16x1024xf32>
    %16 = arith.maximumf %14, %15 : vector<16x1024xf32>
    %17 = arith.truncf %16 : vector<16x1024xf32> to vector<16x1024xbf16>
    %cst_17 = arith.constant dense<0.000000e+00> : vector<16x128xf32>
    %18 = tpu.matmul %17, %2, %cst_17 {dimension_numbers = #tpu.dot_dimension_numbers<[1], [0], [0], [1], [0, 0, 1, 1], [], []>} : vector<16x1024xbf16>, vector<1024x128xbf16>, vector<16x128xf32> -> vector<16x128xf32>
    %19 = vector.broadcast %3 : vector<1x128xf32> to vector<16x128xf32>
    %20 = arith.addf %18, %19 : vector<16x128xf32>
    %cst_18 = arith.constant 0.000000e+00 : f32
    %21 = vector.broadcast %cst_18 : f32 to vector<16x128xf32>
    %22 = arith.maximumf %20, %21 : vector<16x128xf32>
    %23 = arith.truncf %22 : vector<16x128xf32> to vector<16x128xbf16>
    %cst_19 = arith.constant dense<0.000000e+00> : vector<16x1024xf32>
    %24 = tpu.matmul %23, %4, %cst_19 {dimension_numbers = #tpu.dot_dimension_numbers<[1], [0], [0], [1], [0, 0, 1, 1], [], []>} : vector<16x128xbf16>, vector<128x1024xbf16>, vector<16x1024xf32> -> vector<16x1024xf32>
    %25 = vector.broadcast %5 : vector<1x1024xf32> to vector<16x1024xf32>
    %26 = arith.addf %24, %25 : vector<16x1024xf32>
    %cst_20 = arith.constant 0.000000e+00 : f32
    %27 = vector.broadcast %cst_20 : f32 to vector<16x1024xf32>
    %28 = arith.maximumf %26, %27 : vector<16x1024xf32>
    %29 = arith.truncf %28 : vector<16x1024xf32> to vector<16x1024xbf16>
    %cst_21 = arith.constant dense<0.000000e+00> : vector<16x128xf32>
    %30 = tpu.matmul %29, %6, %cst_21 {dimension_numbers = #tpu.dot_dimension_numbers<[1], [0], [0], [1], [0, 0, 1, 1], [], []>} : vector<16x1024xbf16>, vector<1024x128xbf16>, vector<16x128xf32> -> vector<16x128xf32>
    %31 = vector.broadcast %7 : vector<1x128xf32> to vector<16x128xf32>
    %32 = arith.addf %30, %31 : vector<16x128xf32>
    %33 = arith.negf %32 : vector<16x128xf32>
    %34 = math.exp %33 : vector<16x128xf32>
    %cst_22 = arith.constant 1.000000e+00 : f32
    %35 = vector.broadcast %cst_22 : f32 to vector<16x128xf32>
    %36 = arith.addf %35, %34 : vector<16x128xf32>
    %37 = arith.divf %35, %36 : vector<16x128xf32>
    %38 = arith.index_cast %9 : i32 to index
    %c0_23 = arith.constant 0 : index
    %39 = vector.load %arg10[%38, %c0_23] : memref<16x128xf32, #tpu.memory_space<vmem>>, vector<16x128xf32>
    tpu.vector_store %arg10[%38, %c0_23], %37 {strides = array<i32>} : memref<16x128xf32, #tpu.memory_space<vmem>>, vector<16x128xf32>,
    %40 = arith.index_cast %9 : i32 to index
    %c0_24 = arith.constant 0 : index
    %41 = vector.load %arg11[%40, %c0_24] : memref<16x128xf32, #tpu.memory_space<vmem>>, vector<16x128xf32>
    tpu.vector_store %arg11[%40, %c0_24], %22 {strides = array<i32>} : memref<16x128xf32, #tpu.memory_space<vmem>>, vector<16x128xf32>,
    %c1_i32 = arith.constant 1 : i32
    return
  }
  func.func @transform_0(%arg0: i32) -> (i32, i32) {
    %c0_i32 = arith.constant 0 : i32
    %c0_i32_0 = arith.constant 0 : i32
    return %arg0, %c0_i32 : i32, i32
  }
  func.func @transform_1(%arg0: i32) -> (i32, i32) {
    %c0_i32 = arith.constant 0 : i32
    %c0_i32_0 = arith.constant 0 : i32
    %c0_i32_1 = arith.constant 0 : i32
    return %c0_i32, %c0_i32_0 : i32, i32
  }
  func.func @transform_2(%arg0: i32) -> (i32, i32) {
    %c0_i32 = arith.constant 0 : i32
    %c0_i32_0 = arith.constant 0 : i32
    %c0_i32_1 = arith.constant 0 : i32
    return %c0_i32, %c0_i32_0 : i32, i32
  }
  func.func @transform_3(%arg0: i32) -> (i32, i32) {
    %c0_i32 = arith.constant 0 : i32
    %c0_i32_0 = arith.constant 0 : i32
    %c0_i32_1 = arith.constant 0 : i32
    return %c0_i32, %c0_i32_0 : i32, i32
  }
  func.func @transform_4(%arg0: i32) -> (i32, i32) {
    %c0_i32 = arith.constant 0 : i32
    %c0_i32_0 = arith.constant 0 : i32
    %c0_i32_1 = arith.constant 0 : i32
    return %c0_i32, %c0_i32_0 : i32, i32
  }
  func.func @transform_5(%arg0: i32) -> (i32, i32) {
    %c0_i32 = arith.constant 0 : i32
    %c0_i32_0 = arith.constant 0 : i32
    %c0_i32_1 = arith.constant 0 : i32
    return %c0_i32, %c0_i32_0 : i32, i32
  }
  func.func @transform_6(%arg0: i32) -> (i32, i32) {
    %c0_i32 = arith.constant 0 : i32
    %c0_i32_0 = arith.constant 0 : i32
    %c0_i32_1 = arith.constant 0 : i32
    return %c0_i32, %c0_i32_0 : i32, i32
  }
  func.func @transform_7(%arg0: i32) -> (i32, i32) {
    %c0_i32 = arith.constant 0 : i32
    %c0_i32_0 = arith.constant 0 : i32
    %c0_i32_1 = arith.constant 0 : i32
    return %c0_i32, %c0_i32_0 : i32, i32
  }
  func.func @transform_8(%arg0: i32) -> (i32, i32) {
    %c0_i32 = arith.constant 0 : i32
    %c0_i32_0 = arith.constant 0 : i32
    %c0_i32_1 = arith.constant 0 : i32
    return %c0_i32, %c0_i32_0 : i32, i32
  }
  func.func @transform_9(%arg0: i32) -> (i32, i32) {
    %c0_i32 = arith.constant 0 : i32
    %c0_i32_0 = arith.constant 0 : i32
    return %arg0, %c0_i32 : i32, i32
  }
  func.func @transform_10(%arg0: i32) -> (i32, i32) {
    %c0_i32 = arith.constant 0 : i32
    %c0_i32_0 = arith.constant 0 : i32
    return %arg0, %c0_i32 : i32, i32
  }
}

</mosaic_0001>

<llo_original>
// kernel: sae_forward.1
$region0: #{sae_forward.1}
  #allocation0 [shape = 'u32[]', space=smem, size = 0x4, offset = 0x4, fixed_abs, tag = 'smem constant byte address 0x4 - core index']
  #allocation1 [shape = 'u32[144,128]{1,0:T(1,128)}', space=vmem, size = 0x12000, scoped, tag = 'internal scratch']
  %s0 = inlined_call_operand.vmem [shape: bf16[16,128], index: 0, kind: input, shape index: {}]
  %s1 = inlined_call_operand.hbm [shape: bf16[128,1024], index: 1, kind: input, shape index: {}]
  %s2 = inlined_call_operand.vmem [shape: f32[1,1024], index: 2, kind: input, shape index: {}]
  %s3 = inlined_call_operand.hbm [shape: bf16[1024,128], index: 3, kind: input, shape index: {}]
  %s4 = inlined_call_operand.vmem [shape: f32[1,128], index: 4, kind: input, shape index: {}]
  %s5 = inlined_call_operand.hbm [shape: bf16[128,1024], index: 5, kind: input, shape index: {}]
  %s6 = inlined_call_operand.vmem [shape: f32[1,1024], index: 6, kind: input, shape index: {}]
  %s7 = inlined_call_operand.hbm [shape: bf16[1024,128], index: 7, kind: input, shape index: {}]
  %s8 = inlined_call_operand.vmem [shape: f32[1,128], index: 8, kind: input, shape index: {}]
  %s9 = inlined_call_operand.vmem [shape: f32[16,128], index: 9, kind: output, shape index: {0}]
  %s10 = inlined_call_operand.vmem [shape: f32[16,128], index: 10, kind: output, shape index: {1}]
  %11 = xla_tuple %s9, %s10
  %s12 = sld [smem:[#allocation0]]
  $region70: #{sae_forward.1} parent=0
    _
  %s14 = ssub.s32 1, %s12
  %s15 = scalar_select 0, %s14, %s12
  $region1: #{sae_forward.1} parent=0
    #allocation2 [shape = 'u8[262144]{0}', space=vmem, size = 0x40000, scoped, tag = 'input window, operand 1, single buffered']
    #allocation3 [shape = 's32[1]{0}', space=sflag, size = 0x4, scoped, tag = 'scoped memory for sae_forward.1']
    #allocation4 [shape = 'u8[262144]{0}', space=vmem, size = 0x40000, scoped, tag = 'input window, operand 3, single buffered']
    #allocation5 [shape = 's32[1]{0}', space=sflag, size = 0x4, scoped, tag = 'scoped memory for sae_forward.1']
    #allocation6 [shape = 'u8[262144]{0}', space=vmem, size = 0x40000, scoped, tag = 'input window, operand 5, single buffered']
    #allocation7 [shape = 'u8[262144]{0}', space=vmem, size = 0x40000, scoped, tag = 'input window, operand 7, single buffered']
    #allocation8 [shape = 's32[1]{0}', space=sflag, size = 0x4, scoped, tag = 'scoped memory for sae_forward.1']
    %16 = vsyncpa [#allocation3], 0
    %17 = vsyncpa [#allocation5], 0
    %18 = vsyncpa [#allocation8], 0
    // Predicated region
    $region2: #{sae_forward.1} parent=1 // pred_check
      _
    $region3: #{sae_forward.1} parent=1 // pred_check_branch
      %20 = sbr.rel (0) target = $region5
    $region4: #{sae_forward.1} parent=1 // pred_region
      _
    $region5: #{sae_forward.1} parent=1 // pred_fallthru
      _
    // Predicated region
    $region6: #{sae_forward.1} parent=1 // pred_check
      _
    $region7: #{sae_forward.1} parent=1 // pred_check_branch
      %22 = sbr.rel (0) target = $region9
    $region8: #{sae_forward.1} parent=1 // pred_region
      %s24 = ssub.s32 8192, 8192
      %25 = vsyncadd [#allocation3], %s24
      %s26 = sshll.u32 [#allocation2], 4
      %s27 = int_to_ptr.vmem [resolvable:$true] %s26
      %32 = dma.hbm_to_vmem [thread:$0]  %s1, 8192, %s27, [#allocation3], 512, 512, 32
    $region9: #{sae_forward.1} parent=1 // pred_fallthru
      _
    // Predicated region
    $region10: #{sae_forward.1} parent=1 // pred_check
      _
    $region11: #{sae_forward.1} parent=1 // pred_check_branch
      %34 = sbr.rel (0) target = $region13
    $region12: #{sae_forward.1} parent=1 // pred_region
      _
    $region13: #{sae_forward.1} parent=1 // pred_fallthru
      _
    // Predicated region
    $region14: #{sae_forward.1} parent=1 // pred_check
      _
    $region15: #{sae_forward.1} parent=1 // pred_check_branch
      %36 = sbr.rel (0) target = $region17
    $region16: #{sae_forward.1} parent=1 // pred_region
      %s38 = ssub.s32 8192, 8192
      %39 = vsyncadd [#allocation5], %s38
      %s40 = sshll.u32 [#allocation4], 4
      %s41 = int_to_ptr.vmem [resolvable:$true] %s40
      %46 = dma.hbm_to_vmem [thread:$0]  %s3, 8192, %s41, [#allocation5], 64, 64, 4
    $region17: #{sae_forward.1} parent=1 // pred_fallthru
      _
    // Predicated region
    $region18: #{sae_forward.1} parent=1 // pred_check
      _
    $region19: #{sae_forward.1} parent=1 // pred_check_branch
      %48 = sbr.rel (0) target = $region21
    $region20: #{sae_forward.1} parent=1 // pred_region
      _
    $region21: #{sae_forward.1} parent=1 // pred_fallthru
      _
    // Predicated region
    $region22: #{sae_forward.1} parent=1 // pred_check
      _
    $region23: #{sae_forward.1} parent=1 // pred_check_branch
      %50 = sbr.rel (0) target = $region25
    $region24: #{sae_forward.1} parent=1 // pred_region
      %s52 = ssub.s32 8192, 8192
      %53 = vsyncadd [#allocation5], %s52
      %s54 = sshll.u32 [#allocation6], 4
      %s55 = int_to_ptr.vmem [resolvable:$true] %s54
      %60 = dma.hbm_to_vmem [thread:$0]  %s5, 8192, %s55, [#allocation5], 512, 512, 32
    $region25: #{sae_forward.1} parent=1 // pred_fallthru
      _
    // Predicated region
    $region26: #{sae_forward.1} parent=1 // pred_check
      _
    $region27: #{sae_forward.1} parent=1 // pred_check_branch
      %62 = sbr.rel (0) target = $region29
    $region28: #{sae_forward.1} parent=1 // pred_region
      _
    $region29: #{sae_forward.1} parent=1 // pred_fallthru
      _
    // Predicated region
    $region30: #{sae_forward.1} parent=1 // pred_check
      _
    $region31: #{sae_forward.1} parent=1 // pred_check_branch
      %64 = sbr.rel (0) target = $region33
    $region32: #{sae_forward.1} parent=1 // pred_region
      %s66 = ssub.s32 8192, 8192
      %67 = vsyncadd [#allocation8], %s66
      %s68 = sshll.u32 [#allocation7], 4
      %s69 = int_to_ptr.vmem [resolvable:$true] %s68
      %74 = dma.hbm_to_vmem [thread:$0]  %s7, 8192, %s69, [#allocation8], 64, 64, 4
    $region33: #{sae_forward.1} parent=1 // pred_fallthru
      _
    // Predicated region
    $region34: #{sae_forward.1} parent=1 // pred_check
      _
    $region35: #{sae_forward.1} parent=1 // pred_check_branch
      %76 = sbr.rel (0) target = $region37
    $region36: #{sae_forward.1} parent=1 // pred_region
      _
    $region37: #{sae_forward.1} parent=1 // pred_fallthru
      _
    // Predicated region
    $region38: #{sae_forward.1} parent=1 // pred_check
      _
    $region39: #{sae_forward.1} parent=1 // pred_check_branch
      %78 = sbr.rel (0) target = $region41
    $region40: #{sae_forward.1} parent=1 // pred_region
      %79 = dma.done [#allocation3], 8192
    $region41: #{sae_forward.1} parent=1 // pred_fallthru
      _
    // Predicated region
    $region42: #{sae_forward.1} parent=1 // pred_check
      _
    $region43: #{sae_forward.1} parent=1 // pred_check_branch
      %81 = sbr.rel (0) target = $region45
    $region44: #{sae_forward.1} parent=1 // pred_region
      %82 = dma.done [#allocation5], 8192
    $region45: #{sae_forward.1} parent=1 // pred_fallthru
      _
    // Predicated region
    $region46: #{sae_forward.1} parent=1 // pred_check
      _
    $region47: #{sae_forward.1} parent=1 // pred_check_branch
      %84 = sbr.rel (0) target = $region49
    $region48: #{sae_forward.1} parent=1 // pred_region
      %85 = dma.done [#allocation5], 8192
    $region49: #{sae_forward.1} parent=1 // pred_fallthru
      _
    // Predicated region
    $region50: #{sae_forward.1} parent=1 // pred_check
      _
    $region51: #{sae_forward.1} parent=1 // pred_check_branch
      %87 = sbr.rel (0) target = $region53
    $region52: #{sae_forward.1} parent=1 // pred_region
      %88 = dma.done [#allocation8], 8192
    $region53: #{sae_forward.1} parent=1 // pred_fallthru
      _
    %v90 = vld [vmem:[#allocation2] sm:$0xff]
    %v91 = vld [vmem:[#allocation2 + $0x8] sm:$0xff]
    %v92 = vld [vmem:[#allocation2 + $0x10] sm:$0xff]
    %v93 = vld [vmem:[#allocation2 + $0x18] sm:$0xff]
    %v94 = vld [vmem:[#allocation2 + $0x20] sm:$0xff]
    %v95 = vld [vmem:[#allocation2 + $0x28] sm:$0xff]
    %v96 = vld [vmem:[#allocation2 + $0x30] sm:$0xff]
    %v97 = vld [vmem:[#allocation2 + $0x38] sm:$0xff]
    %v98 = vld [vmem:[#allocation2 + $0x40] sm:$0xff]
    %v99 = vld [vmem:[#allocation2 + $0x48] sm:$0xff]
    %v100 = vld [vmem:[#allocation2 + $0x50] sm:$0xff]
    %v101 = vld [vmem:[#allocation2 + $0x58] sm:$0xff]
    %v102 = vld [vmem:[#allocation2 + $0x60] sm:$0xff]
    %v103 = vld [vmem:[#allocation2 + $0x68] sm:$0xff]
    %v104 = vld [vmem:[#allocation2 + $0x70] sm:$0xff]
    %v105 = vld [vmem:[#allocation2 + $0x78] sm:$0xff]
    %v106 = vld [vmem:[#allocation2 + $0x80] sm:$0xff]
    %v107 = vld [vmem:[#allocation2 + $0x88] sm:$0xff]
    %v108 = vld [vmem:[#allocation2 + $0x90] sm:$0xff]
    %v109 = vld [vmem:[#allocation2 + $0x98] sm:$0xff]
    %v110 = vld [vmem:[#allocation2 + $0xa0] sm:$0xff]
    %v111 = vld [vmem:[#allocation2 + $0xa8] sm:$0xff]
    %v112 = vld [vmem:[#allocation2 + $0xb0] sm:$0xff]
    %v113 = vld [vmem:[#allocation2 + $0xb8] sm:$0xff]
    %v114 = vld [vmem:[#allocation2 + $0xc0] sm:$0xff]
    %v115 = vld [vmem:[#allocation2 + $0xc8] sm:$0xff]
    %v116 = vld [vmem:[#allocation2 + $0xd0] sm:$0xff]
    %v117 = vld [vmem:[#allocation2 + $0xd8] sm:$0xff]
    %v118 = vld [vmem:[#allocation2 + $0xe0] sm:$0xff]
    %v119 = vld [vmem:[#allocation2 + $0xe8] sm:$0xff]
    %v120 = vld [vmem:[#allocation2 + $0xf0] sm:$0xff]
    %v121 = vld [vmem:[#allocation2 + $0xf8] sm:$0xff]
    %v122 = vld [vmem:[#allocation2 + $0x100] sm:$0xff]
    %v123 = vld [vmem:[#allocation2 + $0x108] sm:$0xff]
    %v124 = vld [vmem:[#allocation2 + $0x110] sm:$0xff]
    %v125 = vld [vmem:[#allocation2 + $0x118] sm:$0xff]
    %v126 = vld [vmem:[#allocation2 + $0x120] sm:$0xff]
    %v127 = vld [vmem:[#allocation2 + $0x128] sm:$0xff]
    %v128 = vld [vmem:[#allocation2 + $0x130] sm:$0xff]
    %v129 = vld [vmem:[#allocation2 + $0x138] sm:$0xff]
    %v130 = vld [vmem:[#allocation2 + $0x140] sm:$0xff]
    %v131 = vld [vmem:[#allocation2 + $0x148] sm:$0xff]
    %v132 = vld [vmem:[#allocation2 + $0x150] sm:$0xff]
    %v133 = vld [vmem:[#allocation2 + $0x158] sm:$0xff]
    %v134 = vld [vmem:[#allocation2 + $0x160] sm:$0xff]
    %v135 = vld [vmem:[#allocation2 + $0x168] sm:$0xff]
    %v136 = vld [vmem:[#allocation2 + $0x170] sm:$0xff]
    %v137 = vld [vmem:[#allocation2 + $0x178] sm:$0xff]
    %v138 = vld [vmem:[#allocation2 + $0x180] sm:$0xff]
    %v139 = vld [vmem:[#allocation2 + $0x188] sm:$0xff]
    %v140 = vld [vmem:[#allocation2 + $0x190] sm:$0xff]
    %v141 = vld [vmem:[#allocation2 + $0x198] sm:$0xff]
    %v142 = vld [vmem:[#allocation2 + $0x1a0] sm:$0xff]
    %v143 = vld [vmem:[#allocation2 + $0x1a8] sm:$0xff]
    %v144 = vld [vmem:[#allocation2 + $0x1b0] sm:$0xff]
    %v145 = vld [vmem:[#allocation2 + $0x1b8] sm:$0xff]
    %v146 = vld [vmem:[#allocation2 + $0x1c0] sm:$0xff]
    %v147 = vld [vmem:[#allocation2 + $0x1c8] sm:$0xff]
    %v148 = vld [vmem:[#allocation2 + $0x1d0] sm:$0xff]
    %v149 = vld [vmem:[#allocation2 + $0x1d8] sm:$0xff]
    %v150 = vld [vmem:[#allocation2 + $0x1e0] sm:$0xff]
    %v151 = vld [vmem:[#allocation2 + $0x1e8] sm:$0xff]
    %v152 = vld [vmem:[#allocation2 + $0x1f0] sm:$0xff]
    %v153 = vld [vmem:[#allocation2 + $0x1f8] sm:$0xff]
    %v154 = vld [vmem:[%s2] sm:$0xff]
    %v155 = vld [vmem:[#allocation4] sm:$0xf]
    %v156 = vld [vmem:[#allocation4 + $0x4] sm:$0xf]
    %v157 = vld [vmem:[#allocation4 + $0x8] sm:$0xf]
    %v158 = vld [vmem:[#allocation4 + $0xc] sm:$0xf]
    %v159 = vld [vmem:[#allocation4 + $0x10] sm:$0xf]
    %v160 = vld [vmem:[#allocation4 + $0x14] sm:$0xf]
    %v161 = vld [vmem:[#allocation4 + $0x18] sm:$0xf]
    %v162 = vld [vmem:[#allocation4 + $0x1c] sm:$0xf]
    %v163 = vld [vmem:[#allocation4 + $0x20] sm:$0xf]
    %v164 = vld [vmem:[#allocation4 + $0x24] sm:$0xf]
    %v165 = vld [vmem:[#allocation4 + $0x28] sm:$0xf]
    %v166 = vld [vmem:[#allocation4 + $0x2c] sm:$0xf]
    %v167 = vld [vmem:[#allocation4 + $0x30] sm:$0xf]
    %v168 = vld [vmem:[#allocation4 + $0x34] sm:$0xf]
    %v169 = vld [vmem:[#allocation4 + $0x38] sm:$0xf]
    %v170 = vld [vmem:[#allocation4 + $0x3c] sm:$0xf]
    %v171 = vld [vmem:[#allocation4 + $0x40] sm:$0xf]
    %v172 = vld [vmem:[#allocation4 + $0x44] sm:$0xf]
    %v173 = vld [vmem:[#allocation4 + $0x48] sm:$0xf]
    %v174 = vld [vmem:[#allocation4 + $0x4c] sm:$0xf]
    %v175 = vld [vmem:[#allocation4 + $0x50] sm:$0xf]
    %v176 = vld [vmem:[#allocation4 + $0x54] sm:$0xf]
    %v177 = vld [vmem:[#allocation4 + $0x58] sm:$0xf]
    %v178 = vld [vmem:[#allocation4 + $0x5c] sm:$0xf]
    %v179 = vld [vmem:[#allocation4 + $0x60] sm:$0xf]
    %v180 = vld [vmem:[#allocation4 + $0x64] sm:$0xf]
    %v181 = vld [vmem:[#allocation4 + $0x68] sm:$0xf]
    %v182 = vld [vmem:[#allocation4 + $0x6c] sm:$0xf]
    %v183 = vld [vmem:[#allocation4 + $0x70] sm:$0xf]
    %v184 = vld [vmem:[#allocation4 + $0x74] sm:$0xf]
    %v185 = vld [vmem:[#allocation4 + $0x78] sm:$0xf]
    %v186 = vld [vmem:[#allocation4 + $0x7c] sm:$0xf]
    %v187 = vld [vmem:[#allocation4 + $0x80] sm:$0xf]
    %v188 = vld [vmem:[#allocation4 + $0x84] sm:$0xf]
    %v189 = vld [vmem:[#allocation4 + $0x88] sm:$0xf]
    %v190 = vld [vmem:[#allocation4 + $0x8c] sm:$0xf]
    %v191 = vld [vmem:[#allocation4 + $0x90] sm:$0xf]
    %v192 = vld [vmem:[#allocation4 + $0x94] sm:$0xf]
    %v193 = vld [vmem:[#allocation4 + $0x98] sm:$0xf]
    %v194 = vld [vmem:[#allocation4 + $0x9c] sm:$0xf]
    %v195 = vld [vmem:[#allocation4 + $0xa0] sm:$0xf]
    %v196 = vld [vmem:[#allocation4 + $0xa4] sm:$0xf]
    %v197 = vld [vmem:[#allocation4 + $0xa8] sm:$0xf]
    %v198 = vld [vmem:[#allocation4 + $0xac] sm:$0xf]
    %v199 = vld [vmem:[#allocation4 + $0xb0] sm:$0xf]
    %v200 = vld [vmem:[#allocation4 + $0xb4] sm:$0xf]
    %v201 = vld [vmem:[#allocation4 + $0xb8] sm:$0xf]
    %v202 = vld [vmem:[#allocation4 + $0xbc] sm:$0xf]
    %v203 = vld [vmem:[#allocation4 + $0xc0] sm:$0xf]
    %v204 = vld [vmem:[#allocation4 + $0xc4] sm:$0xf]
    %v205 = vld [vmem:[#allocation4 + $0xc8] sm:$0xf]
    %v206 = vld [vmem:[#allocation4 + $0xcc] sm:$0xf]
    %v207 = vld [vmem:[#allocation4 + $0xd0] sm:$0xf]
    %v208 = vld [vmem:[#allocation4 + $0xd4] sm:$0xf]
    %v209 = vld [vmem:[#allocation4 + $0xd8] sm:$0xf]
    %v210 = vld [vmem:[#allocation4 + $0xdc] sm:$0xf]
    %v211 = vld [vmem:[#allocation4 + $0xe0] sm:$0xf]
    %v212 = vld [vmem:[#allocation4 + $0xe4] sm:$0xf]
    %v213 = vld [vmem:[#allocation4 + $0xe8] sm:$0xf]
    %v214 = vld [vmem:[#allocation4 + $0xec] sm:$0xf]
    %v215 = vld [vmem:[#allocation4 + $0xf0] sm:$0xf]
    %v216 = vld [vmem:[#allocation4 + $0xf4] sm:$0xf]
    %v217 = vld [vmem:[#allocation4 + $0xf8] sm:$0xf]
    %v218 = vld [vmem:[#allocation4 + $0xfc] sm:$0xf]
    %v219 = vld [vmem:[#allocation4 + $0x100] sm:$0xf]
    %v220 = vld [vmem:[#allocation4 + $0x104] sm:$0xf]
    %v221 = vld [vmem:[#allocation4 + $0x108] sm:$0xf]
    %v222 = vld [vmem:[#allocation4 + $0x10c] sm:$0xf]
    %v223 = vld [vmem:[#allocation4 + $0x110] sm:$0xf]
    %v224 = vld [vmem:[#allocation4 + $0x114] sm:$0xf]
    %v225 = vld [vmem:[#allocation4 + $0x118] sm:$0xf]
    %v226 = vld [vmem:[#allocation4 + $0x11c] sm:$0xf]
    %v227 = vld [vmem:[#allocation4 + $0x120] sm:$0xf]
    %v228 = vld [vmem:[#allocation4 + $0x124] sm:$0xf]
    %v229 = vld [vmem:[#allocation4 + $0x128] sm:$0xf]
    %v230 = vld [vmem:[#allocation4 + $0x12c] sm:$0xf]
    %v231 = vld [vmem:[#allocation4 + $0x130] sm:$0xf]
    %v232 = vld [vmem:[#allocation4 + $0x134] sm:$0xf]
    %v233 = vld [vmem:[#allocation4 + $0x138] sm:$0xf]
    %v234 = vld [vmem:[#allocation4 + $0x13c] sm:$0xf]
    %v235 = vld [vmem:[#allocation4 + $0x140] sm:$0xf]
    %v236 = vld [vmem:[#allocation4 + $0x144] sm:$0xf]
    %v237 = vld [vmem:[#allocation4 + $0x148] sm:$0xf]
    %v238 = vld [vmem:[#allocation4 + $0x14c] sm:$0xf]
    %v239 = vld [vmem:[#allocation4 + $0x150] sm:$0xf]
    %v240 = vld [vmem:[#allocation4 + $0x154] sm:$0xf]
    %v241 = vld [vmem:[#allocation4 + $0x158] sm:$0xf]
    %v242 = vld [vmem:[#allocation4 + $0x15c] sm:$0xf]
    %v243 = vld [vmem:[#allocation4 + $0x160] sm:$0xf]
    %v244 = vld [vmem:[#allocation4 + $0x164] sm:$0xf]
    %v245 = vld [vmem:[#allocation4 + $0x168] sm:$0xf]
    %v246 = vld [vmem:[#allocation4 + $0x16c] sm:$0xf]
    %v247 = vld [vmem:[#allocation4 + $0x170] sm:$0xf]
    %v248 = vld [vmem:[#allocation4 + $0x174] sm:$0xf]
    %v249 = vld [vmem:[#allocation4 + $0x178] sm:$0xf]
    %v250 = vld [vmem:[#allocation4 + $0x17c] sm:$0xf]
    %v251 = vld [vmem:[#allocation4 + $0x180] sm:$0xf]
    %v252 = vld [vmem:[#allocation4 + $0x184] sm:$0xf]
    %v253 = vld [vmem:[#allocation4 + $0x188] sm:$0xf]
    %v254 = vld [vmem:[#allocation4 + $0x18c] sm:$0xf]
    %v255 = vld [vmem:[#allocation4 + $0x190] sm:$0xf]
    %v256 = vld [vmem:[#allocation4 + $0x194] sm:$0xf]
    %v257 = vld [vmem:[#allocation4 + $0x198] sm:$0xf]
    %v258 = vld [vmem:[#allocation4 + $0x19c] sm:$0xf]
    %v259 = vld [vmem:[#allocation4 + $0x1a0] sm:$0xf]
    %v260 = vld [vmem:[#allocation4 + $0x1a4] sm:$0xf]
    %v261 = vld [vmem:[#allocation4 + $0x1a8] sm:$0xf]
    %v262 = vld [vmem:[#allocation4 + $0x1ac] sm:$0xf]
    %v263 = vld [vmem:[#allocation4 + $0x1b0] sm:$0xf]
    %v264 = vld [vmem:[#allocation4 + $0x1b4] sm:$0xf]
    %v265 = vld [vmem:[#allocation4 + $0x1b8] sm:$0xf]
    %v266 = vld [vmem:[#allocation4 + $0x1bc] sm:$0xf]
    %v267 = vld [vmem:[#allocation4 + $0x1c0] sm:$0xf]
    %v268 = vld [vmem:[#allocation4 + $0x1c4] sm:$0xf]
    %v269 = vld [vmem:[#allocation4 + $0x1c8] sm:$0xf]
    %v270 = vld [vmem:[#allocation4 + $0x1cc] sm:$0xf]
    %v271 = vld [vmem:[#allocation4 + $0x1d0] sm:$0xf]
    %v272 = vld [vmem:[#allocation4 + $0x1d4] sm:$0xf]
    %v273 = vld [vmem:[#allocation4 + $0x1d8] sm:$0xf]
    %v274 = vld [vmem:[#allocation4 + $0x1dc] sm:$0xf]
    %v275 = vld [vmem:[#allocation4 + $0x1e0] sm:$0xf]
    %v276 = vld [vmem:[#allocation4 + $0x1e4] sm:$0xf]
    %v277 = vld [vmem:[#allocation4 + $0x1e8] sm:$0xf]
    %v278 = vld [vmem:[#allocation4 + $0x1ec] sm:$0xf]
    %v279 = vld [vmem:[#allocation4 + $0x1f0] sm:$0xf]
    %v280 = vld [vmem:[#allocation4 + $0x1f4] sm:$0xf]
    %v281 = vld [vmem:[#allocation4 + $0x1f8] sm:$0xf]
    %v282 = vld [vmem:[#allocation4 + $0x1fc] sm:$0xf]
    %v283 = vld [vmem:[%s4] sm:$0x1]
    %v284 = vld [vmem:[#allocation6] sm:$0xff]
    %v285 = vld [vmem:[#allocation6 + $0x8] sm:$0xff]
    %v286 = vld [vmem:[#allocation6 + $0x10] sm:$0xff]
    %v287 = vld [vmem:[#allocation6 + $0x18] sm:$0xff]
    %v288 = vld [vmem:[#allocation6 + $0x20] sm:$0xff]
    %v289 = vld [vmem:[#allocation6 + $0x28] sm:$0xff]
    %v290 = vld [vmem:[#allocation6 + $0x30] sm:$0xff]
    %v291 = vld [vmem:[#allocation6 + $0x38] sm:$0xff]
    %v292 = vld [vmem:[#allocation6 + $0x40] sm:$0xff]
    %v293 = vld [vmem:[#allocation6 + $0x48] sm:$0xff]
    %v294 = vld [vmem:[#allocation6 + $0x50] sm:$0xff]
    %v295 = vld [vmem:[#allocation6 + $0x58] sm:$0xff]
    %v296 = vld [vmem:[#allocation6 + $0x60] sm:$0xff]
    %v297 = vld [vmem:[#allocation6 + $0x68] sm:$0xff]
    %v298 = vld [vmem:[#allocation6 + $0x70] sm:$0xff]
    %v299 = vld [vmem:[#allocation6 + $0x78] sm:$0xff]
    %v300 = vld [vmem:[#allocation6 + $0x80] sm:$0xff]
    %v301 = vld [vmem:[#allocation6 + $0x88] sm:$0xff]
    %v302 = vld [vmem:[#allocation6 + $0x90] sm:$0xff]
    %v303 = vld [vmem:[#allocation6 + $0x98] sm:$0xff]
    %v304 = vld [vmem:[#allocation6 + $0xa0] sm:$0xff]
    %v305 = vld [vmem:[#allocation6 + $0xa8] sm:$0xff]
    %v306 = vld [vmem:[#allocation6 + $0xb0] sm:$0xff]
    %v307 = vld [vmem:[#allocation6 + $0xb8] sm:$0xff]
    %v308 = vld [vmem:[#allocation6 + $0xc0] sm:$0xff]
    %v309 = vld [vmem:[#allocation6 + $0xc8] sm:$0xff]
    %v310 = vld [vmem:[#allocation6 + $0xd0] sm:$0xff]
    %v311 = vld [vmem:[#allocation6 + $0xd8] sm:$0xff]
    %v312 = vld [vmem:[#allocation6 + $0xe0] sm:$0xff]
    %v313 = vld [vmem:[#allocation6 + $0xe8] sm:$0xff]
    %v314 = vld [vmem:[#allocation6 + $0xf0] sm:$0xff]
    %v315 = vld [vmem:[#allocation6 + $0xf8] sm:$0xff]
    %v316 = vld [vmem:[#allocation6 + $0x100] sm:$0xff]
    %v317 = vld [vmem:[#allocation6 + $0x108] sm:$0xff]
    %v318 = vld [vmem:[#allocation6 + $0x110] sm:$0xff]
    %v319 = vld [vmem:[#allocation6 + $0x118] sm:$0xff]
    %v320 = vld [vmem:[#allocation6 + $0x120] sm:$0xff]
    %v321 = vld [vmem:[#allocation6 + $0x128] sm:$0xff]
    %v322 = vld [vmem:[#allocation6 + $0x130] sm:$0xff]
    %v323 = vld [vmem:[#allocation6 + $0x138] sm:$0xff]
    %v324 = vld [vmem:[#allocation6 + $0x140] sm:$0xff]
    %v325 = vld [vmem:[#allocation6 + $0x148] sm:$0xff]
    %v326 = vld [vmem:[#allocation6 + $0x150] sm:$0xff]
    %v327 = vld [vmem:[#allocation6 + $0x158] sm:$0xff]
    %v328 = vld [vmem:[#allocation6 + $0x160] sm:$0xff]
    %v329 = vld [vmem:[#allocation6 + $0x168] sm:$0xff]
    %v330 = vld [vmem:[#allocation6 + $0x170] sm:$0xff]
    %v331 = vld [vmem:[#allocation6 + $0x178] sm:$0xff]
    %v332 = vld [vmem:[#allocation6 + $0x180] sm:$0xff]
    %v333 = vld [vmem:[#allocation6 + $0x188] sm:$0xff]
    %v334 = vld [vmem:[#allocation6 + $0x190] sm:$0xff]
    %v335 = vld [vmem:[#allocation6 + $0x198] sm:$0xff]
    %v336 = vld [vmem:[#allocation6 + $0x1a0] sm:$0xff]
    %v337 = vld [vmem:[#allocation6 + $0x1a8] sm:$0xff]
    %v338 = vld [vmem:[#allocation6 + $0x1b0] sm:$0xff]
    %v339 = vld [vmem:[#allocation6 + $0x1b8] sm:$0xff]
    %v340 = vld [vmem:[#allocation6 + $0x1c0] sm:$0xff]
    %v341 = vld [vmem:[#allocation6 + $0x1c8] sm:$0xff]
    %v342 = vld [vmem:[#allocation6 + $0x1d0] sm:$0xff]
    %v343 = vld [vmem:[#allocation6 + $0x1d8] sm:$0xff]
    %v344 = vld [vmem:[#allocation6 + $0x1e0] sm:$0xff]
    %v345 = vld [vmem:[#allocation6 + $0x1e8] sm:$0xff]
    %v346 = vld [vmem:[#allocation6 + $0x1f0] sm:$0xff]
    %v347 = vld [vmem:[#allocation6 + $0x1f8] sm:$0xff]
    %v348 = vld [vmem:[%s6] sm:$0xff]
    %v349 = vld [vmem:[#allocation7] sm:$0xf]
    %v350 = vld [vmem:[#allocation7 + $0x4] sm:$0xf]
    %v351 = vld [vmem:[#allocation7 + $0x8] sm:$0xf]
    %v352 = vld [vmem:[#allocation7 + $0xc] sm:$0xf]
    %v353 = vld [vmem:[#allocation7 + $0x10] sm:$0xf]
    %v354 = vld [vmem:[#allocation7 + $0x14] sm:$0xf]
    %v355 = vld [vmem:[#allocation7 + $0x18] sm:$0xf]
    %v356 = vld [vmem:[#allocation7 + $0x1c] sm:$0xf]
    %v357 = vld [vmem:[#allocation7 + $0x20] sm:$0xf]
    %v358 = vld [vmem:[#allocation7 + $0x24] sm:$0xf]
    %v359 = vld [vmem:[#allocation7 + $0x28] sm:$0xf]
    %v360 = vld [vmem:[#allocation7 + $0x2c] sm:$0xf]
    %v361 = vld [vmem:[#allocation7 + $0x30] sm:$0xf]
    %v362 = vld [vmem:[#allocation7 + $0x34] sm:$0xf]
    %v363 = vld [vmem:[#allocation7 + $0x38] sm:$0xf]
    %v364 = vld [vmem:[#allocation7 + $0x3c] sm:$0xf]
    %v365 = vld [vmem:[#allocation7 + $0x40] sm:$0xf]
    %v366 = vld [vmem:[#allocation7 + $0x44] sm:$0xf]
    %v367 = vld [vmem:[#allocation7 + $0x48] sm:$0xf]
    %v368 = vld [vmem:[#allocation7 + $0x4c] sm:$0xf]
    %v369 = vld [vmem:[#allocation7 + $0x50] sm:$0xf]
    %v370 = vld [vmem:[#allocation7 + $0x54] sm:$0xf]
    %v371 = vld [vmem:[#allocation7 + $0x58] sm:$0xf]
    %v372 = vld [vmem:[#allocation7 + $0x5c] sm:$0xf]
    %v373 = vld [vmem:[#allocation7 + $0x60] sm:$0xf]
    %v374 = vld [vmem:[#allocation7 + $0x64] sm:$0xf]
    %v375 = vld [vmem:[#allocation7 + $0x68] sm:$0xf]
    %v376 = vld [vmem:[#allocation7 + $0x6c] sm:$0xf]
    %v377 = vld [vmem:[#allocation7 + $0x70] sm:$0xf]
    %v378 = vld [vmem:[#allocation7 + $0x74] sm:$0xf]
    %v379 = vld [vmem:[#allocation7 + $0x78] sm:$0xf]
    %v380 = vld [vmem:[#allocation7 + $0x7c] sm:$0xf]
    %v381 = vld [vmem:[#allocation7 + $0x80] sm:$0xf]
    %v382 = vld [vmem:[#allocation7 + $0x84] sm:$0xf]
    %v383 = vld [vmem:[#allocation7 + $0x88] sm:$0xf]
    %v384 = vld [vmem:[#allocation7 + $0x8c] sm:$0xf]
    %v385 = vld [vmem:[#allocation7 + $0x90] sm:$0xf]
    %v386 = vld [vmem:[#allocation7 + $0x94] sm:$0xf]
    %v387 = vld [vmem:[#allocation7 + $0x98] sm:$0xf]
    %v388 = vld [vmem:[#allocation7 + $0x9c] sm:$0xf]
    %v389 = vld [vmem:[#allocation7 + $0xa0] sm:$0xf]
    %v390 = vld [vmem:[#allocation7 + $0xa4] sm:$0xf]
    %v391 = vld [vmem:[#allocation7 + $0xa8] sm:$0xf]
    %v392 = vld [vmem:[#allocation7 + $0xac] sm:$0xf]
    %v393 = vld [vmem:[#allocation7 + $0xb0] sm:$0xf]
    %v394 = vld [vmem:[#allocation7 + $0xb4] sm:$0xf]
    %v395 = vld [vmem:[#allocation7 + $0xb8] sm:$0xf]
    %v396 = vld [vmem:[#allocation7 + $0xbc] sm:$0xf]
    %v397 = vld [vmem:[#allocation7 + $0xc0] sm:$0xf]
    %v398 = vld [vmem:[#allocation7 + $0xc4] sm:$0xf]
    %v399 = vld [vmem:[#allocation7 + $0xc8] sm:$0xf]
    %v400 = vld [vmem:[#allocation7 + $0xcc] sm:$0xf]
    %v401 = vld [vmem:[#allocation7 + $0xd0] sm:$0xf]
    %v402 = vld [vmem:[#allocation7 + $0xd4] sm:$0xf]
    %v403 = vld [vmem:[#allocation7 + $0xd8] sm:$0xf]
    %v404 = vld [vmem:[#allocation7 + $0xdc] sm:$0xf]
    %v405 = vld [vmem:[#allocation7 + $0xe0] sm:$0xf]
    %v406 = vld [vmem:[#allocation7 + $0xe4] sm:$0xf]
    %v407 = vld [vmem:[#allocation7 + $0xe8] sm:$0xf]
    %v408 = vld [vmem:[#allocation7 + $0xec] sm:$0xf]
    %v409 = vld [vmem:[#allocation7 + $0xf0] sm:$0xf]
    %v410 = vld [vmem:[#allocation7 + $0xf4] sm:$0xf]
    %v411 = vld [vmem:[#allocation7 + $0xf8] sm:$0xf]
    %v412 = vld [vmem:[#allocation7 + $0xfc] sm:$0xf]
    %v413 = vld [vmem:[#allocation7 + $0x100] sm:$0xf]
    %v414 = vld [vmem:[#allocation7 + $0x104] sm:$0xf]
    %v415 = vld [vmem:[#allocation7 + $0x108] sm:$0xf]
    %v416 = vld [vmem:[#allocation7 + $0x10c] sm:$0xf]
    %v417 = vld [vmem:[#allocation7 + $0x110] sm:$0xf]
    %v418 = vld [vmem:[#allocation7 + $0x114] sm:$0xf]
    %v419 = vld [vmem:[#allocation7 + $0x118] sm:$0xf]
    %v420 = vld [vmem:[#allocation7 + $0x11c] sm:$0xf]
    %v421 = vld [vmem:[#allocation7 + $0x120] sm:$0xf]
    %v422 = vld [vmem:[#allocation7 + $0x124] sm:$0xf]
    %v423 = vld [vmem:[#allocation7 + $0x128] sm:$0xf]
    %v424 = vld [vmem:[#allocation7 + $0x12c] sm:$0xf]
    %v425 = vld [vmem:[#allocation7 + $0x130] sm:$0xf]
    %v426 = vld [vmem:[#allocation7 + $0x134] sm:$0xf]
    %v427 = vld [vmem:[#allocation7 + $0x138] sm:$0xf]
    %v428 = vld [vmem:[#allocation7 + $0x13c] sm:$0xf]
    %v429 = vld [vmem:[#allocation7 + $0x140] sm:$0xf]
    %v430 = vld [vmem:[#allocation7 + $0x144] sm:$0xf]
    %v431 = vld [vmem:[#allocation7 + $0x148] sm:$0xf]
    %v432 = vld [vmem:[#allocation7 + $0x14c] sm:$0xf]
    %v433 = vld [vmem:[#allocation7 + $0x150] sm:$0xf]
    %v434 = vld [vmem:[#allocation7 + $0x154] sm:$0xf]
    %v435 = vld [vmem:[#allocation7 + $0x158] sm:$0xf]
    %v436 = vld [vmem:[#allocation7 + $0x15c] sm:$0xf]
    %v437 = vld [vmem:[#allocation7 + $0x160] sm:$0xf]
    %v438 = vld [vmem:[#allocation7 + $0x164] sm:$0xf]
    %v439 = vld [vmem:[#allocation7 + $0x168] sm:$0xf]
    %v440 = vld [vmem:[#allocation7 + $0x16c] sm:$0xf]
    %v441 = vld [vmem:[#allocation7 + $0x170] sm:$0xf]
    %v442 = vld [vmem:[#allocation7 + $0x174] sm:$0xf]
    %v443 = vld [vmem:[#allocation7 + $0x178] sm:$0xf]
    %v444 = vld [vmem:[#allocation7 + $0x17c] sm:$0xf]
    %v445 = vld [vmem:[#allocation7 + $0x180] sm:$0xf]
    %v446 = vld [vmem:[#allocation7 + $0x184] sm:$0xf]
    %v447 = vld [vmem:[#allocation7 + $0x188] sm:$0xf]
    %v448 = vld [vmem:[#allocation7 + $0x18c] sm:$0xf]
    %v449 = vld [vmem:[#allocation7 + $0x190] sm:$0xf]
    %v450 = vld [vmem:[#allocation7 + $0x194] sm:$0xf]
    %v451 = vld [vmem:[#allocation7 + $0x198] sm:$0xf]
    %v452 = vld [vmem:[#allocation7 + $0x19c] sm:$0xf]
    %v453 = vld [vmem:[#allocation7 + $0x1a0] sm:$0xf]
    %v454 = vld [vmem:[#allocation7 + $0x1a4] sm:$0xf]
    %v455 = vld [vmem:[#allocation7 + $0x1a8] sm:$0xf]
    %v456 = vld [vmem:[#allocation7 + $0x1ac] sm:$0xf]
    %v457 = vld [vmem:[#allocation7 + $0x1b0] sm:$0xf]
    %v458 = vld [vmem:[#allocation7 + $0x1b4] sm:$0xf]
    %v459 = vld [vmem:[#allocation7 + $0x1b8] sm:$0xf]
    %v460 = vld [vmem:[#allocation7 + $0x1bc] sm:$0xf]
    %v461 = vld [vmem:[#allocation7 + $0x1c0] sm:$0xf]
    %v462 = vld [vmem:[#allocation7 + $0x1c4] sm:$0xf]
    %v463 = vld [vmem:[#allocation7 + $0x1c8] sm:$0xf]
    %v464 = vld [vmem:[#allocation7 + $0x1cc] sm:$0xf]
    %v465 = vld [vmem:[#allocation7 + $0x1d0] sm:$0xf]
    %v466 = vld [vmem:[#allocation7 + $0x1d4] sm:$0xf]
    %v467 = vld [vmem:[#allocation7 + $0x1d8] sm:$0xf]
    %v468 = vld [vmem:[#allocation7 + $0x1dc] sm:$0xf]
    %v469 = vld [vmem:[#allocation7 + $0x1e0] sm:$0xf]
    %v470 = vld [vmem:[#allocation7 + $0x1e4] sm:$0xf]
    %v471 = vld [vmem:[#allocation7 + $0x1e8] sm:$0xf]
    %v472 = vld [vmem:[#allocation7 + $0x1ec] sm:$0xf]
    %v473 = vld [vmem:[#allocation7 + $0x1f0] sm:$0xf]
    %v474 = vld [vmem:[#allocation7 + $0x1f4] sm:$0xf]
    %v475 = vld [vmem:[#allocation7 + $0x1f8] sm:$0xf]
    %v476 = vld [vmem:[#allocation7 + $0x1fc] sm:$0xf]
    %v477 = vld [vmem:[%s8] sm:$0x1]
    %v478 = vld [vmem:[%s0] sm:$0xf]
    %v479 = vld [vmem:[%s0 + $0x4] sm:$0xf]
    %v481 = vlaneseq
    %v482 = vshrl.u32 %v481, 7
    %v483 = vsub.s32 0, %v482
    %v484 = vrot.slane %v154, %v483
    %v485 = vlaneseq
    %v486 = vshrl.u32 %v485, 7
    %v487 = vsub.s32 1, %v486
    %v488 = vrot.slane %v154, %v487
    %v489 = vlaneseq
    %v490 = vshrl.u32 %v489, 7
    %v491 = vsub.s32 2, %v490
    %v492 = vrot.slane %v154, %v491
    %v493 = vlaneseq
    %v494 = vshrl.u32 %v493, 7
    %v495 = vsub.s32 3, %v494
    %v496 = vrot.slane %v154, %v495
    %v497 = vlaneseq
    %v498 = vshrl.u32 %v497, 7
    %v499 = vsub.s32 4, %v498
    %v500 = vrot.slane %v154, %v499
    %v501 = vlaneseq
    %v502 = vshrl.u32 %v501, 7
    %v503 = vsub.s32 5, %v502
    %v504 = vrot.slane %v154, %v503
    %v505 = vlaneseq
    %v506 = vshrl.u32 %v505, 7
    %v507 = vsub.s32 6, %v506
    %v508 = vrot.slane %v154, %v507
    %v509 = vlaneseq
    %v510 = vshrl.u32 %v509, 7
    %v511 = vsub.s32 7, %v510
    %v512 = vrot.slane %v154, %v511
    %v523 = vunpack.c.l.b16 %v478
    %v524 = vunpack.c.l.b16 %v479
    %v525 = vpack.c.b16 %v524, %v523
    %v591 = vunpack.c.l.b16 %v90
    %v592 = vunpack.c.h.b16 %v90
    %v593 = vunpack.c.l.b16 %v91
    %v594 = vunpack.c.h.b16 %v91
    %v595 = vunpack.c.l.b16 %v92
    %v596 = vunpack.c.h.b16 %v92
    %v597 = vunpack.c.l.b16 %v93
    %v598 = vunpack.c.h.b16 %v93
    %v599 = vunpack.c.l.b16 %v94
    %v600 = vunpack.c.h.b16 %v94
    %v601 = vunpack.c.l.b16 %v95
    %v602 = vunpack.c.h.b16 %v95
    %v603 = vunpack.c.l.b16 %v96
    %v604 = vunpack.c.h.b16 %v96
    %v605 = vunpack.c.l.b16 %v97
    %v606 = vunpack.c.h.b16 %v97
    %v607 = vunpack.c.l.b16 %v98
    %v608 = vunpack.c.h.b16 %v98
    %v609 = vunpack.c.l.b16 %v99
    %v610 = vunpack.c.h.b16 %v99
    %v611 = vunpack.c.l.b16 %v100
    %v612 = vunpack.c.h.b16 %v100
    %v613 = vunpack.c.l.b16 %v101
    %v614 = vunpack.c.h.b16 %v101
    %v615 = vunpack.c.l.b16 %v102
    %v616 = vunpack.c.h.b16 %v102
    %v617 = vunpack.c.l.b16 %v103
    %v618 = vunpack.c.h.b16 %v103
    %v619 = vunpack.c.l.b16 %v104
    %v620 = vunpack.c.h.b16 %v104
    %v621 = vunpack.c.l.b16 %v105
    %v622 = vunpack.c.h.b16 %v105
    %v623 = vunpack.c.l.b16 %v106
    %v624 = vunpack.c.h.b16 %v106
    %v625 = vunpack.c.l.b16 %v107
    %v626 = vunpack.c.h.b16 %v107
    %v627 = vunpack.c.l.b16 %v108
    %v628 = vunpack.c.h.b16 %v108
    %v629 = vunpack.c.l.b16 %v109
    %v630 = vunpack.c.h.b16 %v109
    %v631 = vunpack.c.l.b16 %v110
    %v632 = vunpack.c.h.b16 %v110
    %v633 = vunpack.c.l.b16 %v111
    %v634 = vunpack.c.h.b16 %v111
    %v635 = vunpack.c.l.b16 %v112
    %v636 = vunpack.c.h.b16 %v112
    %v637 = vunpack.c.l.b16 %v113
    %v638 = vunpack.c.h.b16 %v113
    %v639 = vunpack.c.l.b16 %v114
    %v640 = vunpack.c.h.b16 %v114
    %v641 = vunpack.c.l.b16 %v115
    %v642 = vunpack.c.h.b16 %v115
    %v643 = vunpack.c.l.b16 %v116
    %v644 = vunpack.c.h.b16 %v116
    %v645 = vunpack.c.l.b16 %v117
    %v646 = vunpack.c.h.b16 %v117
    %v647 = vunpack.c.l.b16 %v118
    %v648 = vunpack.c.h.b16 %v118
    %v649 = vunpack.c.l.b16 %v119
    %v650 = vunpack.c.h.b16 %v119
    %v651 = vunpack.c.l.b16 %v120
    %v652 = vunpack.c.h.b16 %v120
    %v653 = vunpack.c.l.b16 %v121
    %v654 = vunpack.c.h.b16 %v121
    %v655 = vunpack.c.l.b16 %v122
    %v656 = vunpack.c.h.b16 %v122
    %v657 = vunpack.c.l.b16 %v123
    %v658 = vunpack.c.h.b16 %v123
    %v659 = vunpack.c.l.b16 %v124
    %v660 = vunpack.c.h.b16 %v124
    %v661 = vunpack.c.l.b16 %v125
    %v662 = vunpack.c.h.b16 %v125
    %v663 = vunpack.c.l.b16 %v126
    %v664 = vunpack.c.h.b16 %v126
    %v665 = vunpack.c.l.b16 %v127
    %v666 = vunpack.c.h.b16 %v127
    %v667 = vunpack.c.l.b16 %v128
    %v668 = vunpack.c.h.b16 %v128
    %v669 = vunpack.c.l.b16 %v129
    %v670 = vunpack.c.h.b16 %v129
    %v671 = vunpack.c.l.b16 %v130
    %v672 = vunpack.c.h.b16 %v130
    %v673 = vunpack.c.l.b16 %v131
    %v674 = vunpack.c.h.b16 %v131
    %v675 = vunpack.c.l.b16 %v132
    %v676 = vunpack.c.h.b16 %v132
    %v677 = vunpack.c.l.b16 %v133
    %v678 = vunpack.c.h.b16 %v133
    %v679 = vunpack.c.l.b16 %v134
    %v680 = vunpack.c.h.b16 %v134
    %v681 = vunpack.c.l.b16 %v135
    %v682 = vunpack.c.h.b16 %v135
    %v683 = vunpack.c.l.b16 %v136
    %v684 = vunpack.c.h.b16 %v136
    %v685 = vunpack.c.l.b16 %v137
    %v686 = vunpack.c.h.b16 %v137
    %v687 = vunpack.c.l.b16 %v138
    %v688 = vunpack.c.h.b16 %v138
    %v689 = vunpack.c.l.b16 %v139
    %v690 = vunpack.c.h.b16 %v139
    %v691 = vunpack.c.l.b16 %v140
    %v692 = vunpack.c.h.b16 %v140
    %v693 = vunpack.c.l.b16 %v141
    %v694 = vunpack.c.h.b16 %v141
    %v695 = vunpack.c.l.b16 %v142
    %v696 = vunpack.c.h.b16 %v142
    %v697 = vunpack.c.l.b16 %v143
    %v698 = vunpack.c.h.b16 %v143
    %v699 = vunpack.c.l.b16 %v144
    %v700 = vunpack.c.h.b16 %v144
    %v701 = vunpack.c.l.b16 %v145
    %v702 = vunpack.c.h.b16 %v145
    %v703 = vunpack.c.l.b16 %v146
    %v704 = vunpack.c.h.b16 %v146
    %v705 = vunpack.c.l.b16 %v147
    %v706 = vunpack.c.h.b16 %v147
    %v707 = vunpack.c.l.b16 %v148
    %v708 = vunpack.c.h.b16 %v148
    %v709 = vunpack.c.l.b16 %v149
    %v710 = vunpack.c.h.b16 %v149
    %v711 = vunpack.c.l.b16 %v150
    %v712 = vunpack.c.h.b16 %v150
    %v713 = vunpack.c.l.b16 %v151
    %v714 = vunpack.c.h.b16 %v151
    %v715 = vunpack.c.l.b16 %v152
    %v716 = vunpack.c.h.b16 %v152
    %v717 = vunpack.c.l.b16 %v153
    %v718 = vunpack.c.h.b16 %v153
    %v719 = vpack.c.b16 %v599, %v591
    %v720 = vpack.c.b16 %v600, %v592
    %v721 = vpack.c.b16 %v601, %v593
    %v722 = vpack.c.b16 %v602, %v594
    %v723 = vpack.c.b16 %v603, %v595
    %v724 = vpack.c.b16 %v604, %v596
    %v725 = vpack.c.b16 %v605, %v597
    %v726 = vpack.c.b16 %v606, %v598
    %v727 = vpack.c.b16 %v615, %v607
    %v728 = vpack.c.b16 %v616, %v608
    %v729 = vpack.c.b16 %v617, %v609
    %v730 = vpack.c.b16 %v618, %v610
    %v731 = vpack.c.b16 %v619, %v611
    %v732 = vpack.c.b16 %v620, %v612
    %v733 = vpack.c.b16 %v621, %v613
    %v734 = vpack.c.b16 %v622, %v614
    %v735 = vpack.c.b16 %v631, %v623
    %v736 = vpack.c.b16 %v632, %v624
    %v737 = vpack.c.b16 %v633, %v625
    %v738 = vpack.c.b16 %v634, %v626
    %v739 = vpack.c.b16 %v635, %v627
    %v740 = vpack.c.b16 %v636, %v628
    %v741 = vpack.c.b16 %v637, %v629
    %v742 = vpack.c.b16 %v638, %v630
    %v743 = vpack.c.b16 %v647, %v639
    %v744 = vpack.c.b16 %v648, %v640
    %v745 = vpack.c.b16 %v649, %v641
    %v746 = vpack.c.b16 %v650, %v642
    %v747 = vpack.c.b16 %v651, %v643
    %v748 = vpack.c.b16 %v652, %v644
    %v749 = vpack.c.b16 %v653, %v645
    %v750 = vpack.c.b16 %v654, %v646
    %v751 = vpack.c.b16 %v663, %v655
    %v752 = vpack.c.b16 %v664, %v656
    %v753 = vpack.c.b16 %v665, %v657
    %v754 = vpack.c.b16 %v666, %v658
    %v755 = vpack.c.b16 %v667, %v659
    %v756 = vpack.c.b16 %v668, %v660
    %v757 = vpack.c.b16 %v669, %v661
    %v758 = vpack.c.b16 %v670, %v662
    %v759 = vpack.c.b16 %v679, %v671
    %v760 = vpack.c.b16 %v680, %v672
    %v761 = vpack.c.b16 %v681, %v673
    %v762 = vpack.c.b16 %v682, %v674
    %v763 = vpack.c.b16 %v683, %v675
    %v764 = vpack.c.b16 %v684, %v676
    %v765 = vpack.c.b16 %v685, %v677
    %v766 = vpack.c.b16 %v686, %v678
    %v767 = vpack.c.b16 %v695, %v687
    %v768 = vpack.c.b16 %v696, %v688
    %v769 = vpack.c.b16 %v697, %v689
    %v770 = vpack.c.b16 %v698, %v690
    %v771 = vpack.c.b16 %v699, %v691
    %v772 = vpack.c.b16 %v700, %v692
    %v773 = vpack.c.b16 %v701, %v693
    %v774 = vpack.c.b16 %v702, %v694
    %v775 = vpack.c.b16 %v711, %v703
    %v776 = vpack.c.b16 %v712, %v704
    %v777 = vpack.c.b16 %v713, %v705
    %v778 = vpack.c.b16 %v714, %v706
    %v779 = vpack.c.b16 %v715, %v707
    %v780 = vpack.c.b16 %v716, %v708
    %v781 = vpack.c.b16 %v717, %v709
    %v782 = vpack.c.b16 %v718, %v710
    %847 = vmatprep.subr.bf16.mxu0 %v776
    %848 = vmatpush1.bf16.msra.mxu0 %v775
    %849 = vmatprep.subr.bf16.mxu0 %v768
    %850 = vmatpush1.bf16.msra.mxu0 %v767
    %851 = vmatprep.subr.bf16.mxu0 %v760
    %852 = vmatpush1.bf16.msra.mxu0 %v759
    %853 = vmatprep.subr.bf16.mxu0 %v752
    %854 = vmatpush1.bf16.msra.mxu0 %v751
    %855 = vmatprep.subr.bf16.mxu0 %v744
    %856 = vmatpush1.bf16.msra.mxu0 %v743
    %857 = vmatprep.subr.bf16.mxu0 %v736
    %858 = vmatpush1.bf16.msra.mxu0 %v735
    %859 = vmatprep.subr.bf16.mxu0 %v728
    %860 = vmatpush1.bf16.msra.mxu0 %v727
    %861 = vmatprep.subr.bf16.mxu0 %v720
    %862 = vmatpush1.bf16.msra.mxu0 %v719
    %863 = vmatprep.subr.bf16.mxu0 0
    %864 = vmatpush2.bf16.msra.mxu0 0
    %865 = vmatprep.subr.bf16.mxu0 0
    %866 = vmatpush2.bf16.msra.mxu0 0
    %867 = vmatprep.subr.bf16.mxu0 0
    %868 = vmatpush2.bf16.msra.mxu0 0
    %869 = vmatprep.subr.bf16.mxu0 0
    %870 = vmatpush2.bf16.msra.mxu0 0
    %871 = vmatprep.subr.bf16.mxu0 0
    %872 = vmatpush2.bf16.msra.mxu0 0
    %873 = vmatprep.subr.bf16.mxu0 0
    %874 = vmatpush2.bf16.msra.mxu0 0
    %875 = vmatprep.subr.bf16.mxu0 0
    %876 = vmatpush2.bf16.msra.mxu0 0
    %877 = vmatprep.subr.bf16.mxu0 0
    %878 = vmatpush2.bf16.msra.mxu0 0
    %879 = vmatprep.mubr.bf16.mxu0 0
    %880 = vmatmul.mubr.bf16.gmra.mxu0 %v525
    %v881 = vpop.f32.mrf.mxu0
    %v882 = vadd.f32 %v484, %v881
    %v883 = vpop.f32.mrf.mxu0
    %v884 = vadd.f32 %v488, %v883
    %v885 = vpop.f32.mrf.mxu0
    %v886 = vadd.f32 %v484, %v885
    %v887 = vpop.f32.mrf.mxu0
    %v888 = vadd.f32 %v488, %v887
    %889 = vdwg.mxu0
    %890 = vmatprep.subr.bf16.mxu0 %v778
    %891 = vmatpush1.bf16.msra.mxu0 %v777
    %892 = vmatprep.subr.bf16.mxu0 %v770
    %893 = vmatpush1.bf16.msra.mxu0 %v769
    %894 = vmatprep.subr.bf16.mxu0 %v762
    %895 = vmatpush1.bf16.msra.mxu0 %v761
    %896 = vmatprep.subr.bf16.mxu0 %v754
    %897 = vmatpush1.bf16.msra.mxu0 %v753
    %898 = vmatprep.subr.bf16.mxu0 %v746
    %899 = vmatpush1.bf16.msra.mxu0 %v745
    %900 = vmatprep.subr.bf16.mxu0 %v738
    %901 = vmatpush1.bf16.msra.mxu0 %v737
    %902 = vmatprep.subr.bf16.mxu0 %v730
    %903 = vmatpush1.bf16.msra.mxu0 %v729
    %904 = vmatprep.subr.bf16.mxu0 %v722
    %905 = vmatpush1.bf16.msra.mxu0 %v721
    %906 = vmatprep.subr.bf16.mxu0 0
    %907 = vmatpush2.bf16.msra.mxu0 0
    %908 = vmatprep.subr.bf16.mxu0 0
    %909 = vmatpush2.bf16.msra.mxu0 0
    %910 = vmatprep.subr.bf16.mxu0 0
    %911 = vmatpush2.bf16.msra.mxu0 0
    %912 = vmatprep.subr.bf16.mxu0 0
    %913 = vmatpush2.bf16.msra.mxu0 0
    %914 = vmatprep.subr.bf16.mxu0 0
    %915 = vmatpush2.bf16.msra.mxu0 0
    %916 = vmatprep.subr.bf16.mxu0 0
    %917 = vmatpush2.bf16.msra.mxu0 0
    %918 = vmatprep.subr.bf16.mxu0 0
    %919 = vmatpush2.bf16.msra.mxu0 0
    %920 = vmatprep.subr.bf16.mxu0 0
    %921 = vmatpush2.bf16.msra.mxu0 0
    %922 = vmatprep.mubr.bf16.mxu0 0
    %923 = vmatmul.mubr.bf16.gmra.mxu0 %v525
    %v924 = vpop.f32.mrf.mxu0
    %v925 = vadd.f32 %v492, %v924
    %v926 = vpop.f32.mrf.mxu0
    %v927 = vadd.f32 %v496, %v926
    %v928 = vpop.f32.mrf.mxu0
    %v929 = vadd.f32 %v492, %v928
    %v930 = vpop.f32.mrf.mxu0
    %v931 = vadd.f32 %v496, %v930
    %932 = vdwg.mxu0
    %933 = vmatprep.subr.bf16.mxu0 %v780
    %934 = vmatpush1.bf16.msra.mxu0 %v779
    %935 = vmatprep.subr.bf16.mxu0 %v772
    %936 = vmatpush1.bf16.msra.mxu0 %v771
    %937 = vmatprep.subr.bf16.mxu0 %v764
    %938 = vmatpush1.bf16.msra.mxu0 %v763
    %939 = vmatprep.subr.bf16.mxu0 %v756
    %940 = vmatpush1.bf16.msra.mxu0 %v755
    %941 = vmatprep.subr.bf16.mxu0 %v748
    %942 = vmatpush1.bf16.msra.mxu0 %v747
    %943 = vmatprep.subr.bf16.mxu0 %v740
    %944 = vmatpush1.bf16.msra.mxu0 %v739
    %945 = vmatprep.subr.bf16.mxu0 %v732
    %946 = vmatpush1.bf16.msra.mxu0 %v731
    %947 = vmatprep.subr.bf16.mxu0 %v724
    %948 = vmatpush1.bf16.msra.mxu0 %v723
    %949 = vmatprep.subr.bf16.mxu0 0
    %950 = vmatpush2.bf16.msra.mxu0 0
    %951 = vmatprep.subr.bf16.mxu0 0
    %952 = vmatpush2.bf16.msra.mxu0 0
    %953 = vmatprep.subr.bf16.mxu0 0
    %954 = vmatpush2.bf16.msra.mxu0 0
    %955 = vmatprep.subr.bf16.mxu0 0
    %956 = vmatpush2.bf16.msra.mxu0 0
    %957 = vmatprep.subr.bf16.mxu0 0
    %958 = vmatpush2.bf16.msra.mxu0 0
    %959 = vmatprep.subr.bf16.mxu0 0
    %960 = vmatpush2.bf16.msra.mxu0 0
    %961 = vmatprep.subr.bf16.mxu0 0
    %962 = vmatpush2.bf16.msra.mxu0 0
    %963 = vmatprep.subr.bf16.mxu0 0
    %964 = vmatpush2.bf16.msra.mxu0 0
    %965 = vmatprep.mubr.bf16.mxu0 0
    %966 = vmatmul.mubr.bf16.gmra.mxu0 %v525
    %v967 = vpop.f32.mrf.mxu0
    %v968 = vadd.f32 %v500, %v967
    %v969 = vpop.f32.mrf.mxu0
    %v970 = vadd.f32 %v504, %v969
    %v971 = vpop.f32.mrf.mxu0
    %v972 = vadd.f32 %v500, %v971
    %v973 = vpop.f32.mrf.mxu0
    %v974 = vadd.f32 %v504, %v973
    %975 = vdwg.mxu0
    %976 = vmatprep.subr.bf16.mxu0 %v782
    %977 = vmatpush1.bf16.msra.mxu0 %v781
    %978 = vmatprep.subr.bf16.mxu0 %v774
    %979 = vmatpush1.bf16.msra.mxu0 %v773
    %980 = vmatprep.subr.bf16.mxu0 %v766
    %981 = vmatpush1.bf16.msra.mxu0 %v765
    %982 = vmatprep.subr.bf16.mxu0 %v758
    %983 = vmatpush1.bf16.msra.mxu0 %v757
    %984 = vmatprep.subr.bf16.mxu0 %v750
    %985 = vmatpush1.bf16.msra.mxu0 %v749
    %986 = vmatprep.subr.bf16.mxu0 %v742
    %987 = vmatpush1.bf16.msra.mxu0 %v741
    %988 = vmatprep.subr.bf16.mxu0 %v734
    %989 = vmatpush1.bf16.msra.mxu0 %v733
    %990 = vmatprep.subr.bf16.mxu0 %v726
    %991 = vmatpush1.bf16.msra.mxu0 %v725
    %992 = vmatprep.subr.bf16.mxu0 0
    %993 = vmatpush2.bf16.msra.mxu0 0
    %994 = vmatprep.subr.bf16.mxu0 0
    %995 = vmatpush2.bf16.msra.mxu0 0
    %996 = vmatprep.subr.bf16.mxu0 0
    %997 = vmatpush2.bf16.msra.mxu0 0
    %998 = vmatprep.subr.bf16.mxu0 0
    %999 = vmatpush2.bf16.msra.mxu0 0
    %1000 = vmatprep.subr.bf16.mxu0 0
    %1001 = vmatpush2.bf16.msra.mxu0 0
    %1002 = vmatprep.subr.bf16.mxu0 0
    %1003 = vmatpush2.bf16.msra.mxu0 0
    %1004 = vmatprep.subr.bf16.mxu0 0
    %1005 = vmatpush2.bf16.msra.mxu0 0
    %1006 = vmatprep.subr.bf16.mxu0 0
    %1007 = vmatpush2.bf16.msra.mxu0 0
    %1008 = vmatprep.mubr.bf16.mxu0 0
    %1009 = vmatmul.mubr.bf16.gmra.mxu0 %v525
    %v1010 = vpop.f32.mrf.mxu0
    %v1011 = vadd.f32 %v508, %v1010
    %v1012 = vpop.f32.mrf.mxu0
    %v1013 = vadd.f32 %v512, %v1012
    %v1014 = vpop.f32.mrf.mxu0
    %v1015 = vadd.f32 %v508, %v1014
    %v1016 = vpop.f32.mrf.mxu0
    %v1017 = vadd.f32 %v512, %v1016
    %1018 = vdwg.mxu0
    %v1019 = vmax.f32 %v882, 0.0
    %v1020 = vmax.f32 %v884, 0.0
    %v1021 = vmax.f32 %v925, 0.0
    %v1022 = vmax.f32 %v927, 0.0
    %v1023 = vmax.f32 %v968, 0.0
    %v1024 = vmax.f32 %v970, 0.0
    %v1025 = vmax.f32 %v1011, 0.0
    %v1026 = vmax.f32 %v1013, 0.0
    %v1027 = vmax.f32 %v886, 0.0
    %v1028 = vmax.f32 %v888, 0.0
    %v1029 = vmax.f32 %v929, 0.0
    %v1030 = vmax.f32 %v931, 0.0
    %v1031 = vmax.f32 %v972, 0.0
    %v1032 = vmax.f32 %v974, 0.0
    %v1033 = vmax.f32 %v1015, 0.0
    %v1034 = vmax.f32 %v1017, 0.0
    %v1035 = vpack.c.bf16 %v1027, %v1019
    %v1036 = vpack.c.bf16 %v1028, %v1020
    %v1037 = vpack.c.bf16 %v1029, %v1021
    %v1038 = vpack.c.bf16 %v1030, %v1022
    %v1039 = vpack.c.bf16 %v1031, %v1023
    %v1040 = vpack.c.bf16 %v1032, %v1024
    %v1041 = vpack.c.bf16 %v1033, %v1025
    %v1042 = vpack.c.bf16 %v1034, %v1026
    %v1044 = vlaneseq
    %v1045 = vshrl.u32 %v1044, 7
    %v1046 = vsub.s32 0, %v1045
    %v1047 = vrot.slane %v283, %v1046
    %v1177 = vunpack.c.l.b16 %v155
    %v1178 = vunpack.c.l.b16 %v156
    %v1179 = vunpack.c.l.b16 %v157
    %v1180 = vunpack.c.l.b16 %v158
    %v1181 = vunpack.c.l.b16 %v159
    %v1182 = vunpack.c.l.b16 %v160
    %v1183 = vunpack.c.l.b16 %v161
    %v1184 = vunpack.c.l.b16 %v162
    %v1185 = vunpack.c.l.b16 %v163
    %v1186 = vunpack.c.l.b16 %v164
    %v1187 = vunpack.c.l.b16 %v165
    %v1188 = vunpack.c.l.b16 %v166
    %v1189 = vunpack.c.l.b16 %v167
    %v1190 = vunpack.c.l.b16 %v168
    %v1191 = vunpack.c.l.b16 %v169
    %v1192 = vunpack.c.l.b16 %v170
    %v1193 = vunpack.c.l.b16 %v171
    %v1194 = vunpack.c.l.b16 %v172
    %v1195 = vunpack.c.l.b16 %v173
    %v1196 = vunpack.c.l.b16 %v174
    %v1197 = vunpack.c.l.b16 %v175
    %v1198 = vunpack.c.l.b16 %v176
    %v1199 = vunpack.c.l.b16 %v177
    %v1200 = vunpack.c.l.b16 %v178
    %v1201 = vunpack.c.l.b16 %v179
    %v1202 = vunpack.c.l.b16 %v180
    %v1203 = vunpack.c.l.b16 %v181
    %v1204 = vunpack.c.l.b16 %v182
    %v1205 = vunpack.c.l.b16 %v183
    %v1206 = vunpack.c.l.b16 %v184
    %v1207 = vunpack.c.l.b16 %v185
    %v1208 = vunpack.c.l.b16 %v186
    %v1209 = vunpack.c.l.b16 %v187
    %v1210 = vunpack.c.l.b16 %v188
    %v1211 = vunpack.c.l.b16 %v189
    %v1212 = vunpack.c.l.b16 %v190
    %v1213 = vunpack.c.l.b16 %v191
    %v1214 = vunpack.c.l.b16 %v192
    %v1215 = vunpack.c.l.b16 %v193
    %v1216 = vunpack.c.l.b16 %v194
    %v1217 = vunpack.c.l.b16 %v195
    %v1218 = vunpack.c.l.b16 %v196
    %v1219 = vunpack.c.l.b16 %v197
    %v1220 = vunpack.c.l.b16 %v198
    %v1221 = vunpack.c.l.b16 %v199
    %v1222 = vunpack.c.l.b16 %v200
    %v1223 = vunpack.c.l.b16 %v201
    %v1224 = vunpack.c.l.b16 %v202
    %v1225 = vunpack.c.l.b16 %v203
    %v1226 = vunpack.c.l.b16 %v204
    %v1227 = vunpack.c.l.b16 %v205
    %v1228 = vunpack.c.l.b16 %v206
    %v1229 = vunpack.c.l.b16 %v207
    %v1230 = vunpack.c.l.b16 %v208
    %v1231 = vunpack.c.l.b16 %v209
    %v1232 = vunpack.c.l.b16 %v210
    %v1233 = vunpack.c.l.b16 %v211
    %v1234 = vunpack.c.l.b16 %v212
    %v1235 = vunpack.c.l.b16 %v213
    %v1236 = vunpack.c.l.b16 %v214
    %v1237 = vunpack.c.l.b16 %v215
    %v1238 = vunpack.c.l.b16 %v216
    %v1239 = vunpack.c.l.b16 %v217
    %v1240 = vunpack.c.l.b16 %v218
    %v1241 = vunpack.c.l.b16 %v219
    %v1242 = vunpack.c.l.b16 %v220
    %v1243 = vunpack.c.l.b16 %v221
    %v1244 = vunpack.c.l.b16 %v222
    %v1245 = vunpack.c.l.b16 %v223
    %v1246 = vunpack.c.l.b16 %v224
    %v1247 = vunpack.c.l.b16 %v225
    %v1248 = vunpack.c.l.b16 %v226
    %v1249 = vunpack.c.l.b16 %v227
    %v1250 = vunpack.c.l.b16 %v228
    %v1251 = vunpack.c.l.b16 %v229
    %v1252 = vunpack.c.l.b16 %v230
    %v1253 = vunpack.c.l.b16 %v231
    %v1254 = vunpack.c.l.b16 %v232
    %v1255 = vunpack.c.l.b16 %v233
    %v1256 = vunpack.c.l.b16 %v234
    %v1257 = vunpack.c.l.b16 %v235
    %v1258 = vunpack.c.l.b16 %v236
    %v1259 = vunpack.c.l.b16 %v237
    %v1260 = vunpack.c.l.b16 %v238
    %v1261 = vunpack.c.l.b16 %v239
    %v1262 = vunpack.c.l.b16 %v240
    %v1263 = vunpack.c.l.b16 %v241
    %v1264 = vunpack.c.l.b16 %v242
    %v1265 = vunpack.c.l.b16 %v243
    %v1266 = vunpack.c.l.b16 %v244
    %v1267 = vunpack.c.l.b16 %v245
    %v1268 = vunpack.c.l.b16 %v246
    %v1269 = vunpack.c.l.b16 %v247
    %v1270 = vunpack.c.l.b16 %v248
    %v1271 = vunpack.c.l.b16 %v249
    %v1272 = vunpack.c.l.b16 %v250
    %v1273 = vunpack.c.l.b16 %v251
    %v1274 = vunpack.c.l.b16 %v252
    %v1275 = vunpack.c.l.b16 %v253
    %v1276 = vunpack.c.l.b16 %v254
    %v1277 = vunpack.c.l.b16 %v255
    %v1278 = vunpack.c.l.b16 %v256
    %v1279 = vunpack.c.l.b16 %v257
    %v1280 = vunpack.c.l.b16 %v258
    %v1281 = vunpack.c.l.b16 %v259
    %v1282 = vunpack.c.l.b16 %v260
    %v1283 = vunpack.c.l.b16 %v261
    %v1284 = vunpack.c.l.b16 %v262
    %v1285 = vunpack.c.l.b16 %v263
    %v1286 = vunpack.c.l.b16 %v264
    %v1287 = vunpack.c.l.b16 %v265
    %v1288 = vunpack.c.l.b16 %v266
    %v1289 = vunpack.c.l.b16 %v267
    %v1290 = vunpack.c.l.b16 %v268
    %v1291 = vunpack.c.l.b16 %v269
    %v1292 = vunpack.c.l.b16 %v270
    %v1293 = vunpack.c.l.b16 %v271
    %v1294 = vunpack.c.l.b16 %v272
    %v1295 = vunpack.c.l.b16 %v273
    %v1296 = vunpack.c.l.b16 %v274
    %v1297 = vunpack.c.l.b16 %v275
    %v1298 = vunpack.c.l.b16 %v276
    %v1299 = vunpack.c.l.b16 %v277
    %v1300 = vunpack.c.l.b16 %v278
    %v1301 = vunpack.c.l.b16 %v279
    %v1302 = vunpack.c.l.b16 %v280
    %v1303 = vunpack.c.l.b16 %v281
    %v1304 = vunpack.c.l.b16 %v282
    %v1305 = vpack.c.b16 %v1178, %v1177
    %v1306 = vpack.c.b16 %v1180, %v1179
    %v1307 = vpack.c.b16 %v1182, %v1181
    %v1308 = vpack.c.b16 %v1184, %v1183
    %v1309 = vpack.c.b16 %v1186, %v1185
    %v1310 = vpack.c.b16 %v1188, %v1187
    %v1311 = vpack.c.b16 %v1190, %v1189
    %v1312 = vpack.c.b16 %v1192, %v1191
    %v1313 = vpack.c.b16 %v1194, %v1193
    %v1314 = vpack.c.b16 %v1196, %v1195
    %v1315 = vpack.c.b16 %v1198, %v1197
    %v1316 = vpack.c.b16 %v1200, %v1199
    %v1317 = vpack.c.b16 %v1202, %v1201
    %v1318 = vpack.c.b16 %v1204, %v1203
    %v1319 = vpack.c.b16 %v1206, %v1205
    %v1320 = vpack.c.b16 %v1208, %v1207
    %v1321 = vpack.c.b16 %v1210, %v1209
    %v1322 = vpack.c.b16 %v1212, %v1211
    %v1323 = vpack.c.b16 %v1214, %v1213
    %v1324 = vpack.c.b16 %v1216, %v1215
    %v1325 = vpack.c.b16 %v1218, %v1217
    %v1326 = vpack.c.b16 %v1220, %v1219
    %v1327 = vpack.c.b16 %v1222, %v1221
    %v1328 = vpack.c.b16 %v1224, %v1223
    %v1329 = vpack.c.b16 %v1226, %v1225
    %v1330 = vpack.c.b16 %v1228, %v1227
    %v1331 = vpack.c.b16 %v1230, %v1229
    %v1332 = vpack.c.b16 %v1232, %v1231
    %v1333 = vpack.c.b16 %v1234, %v1233
    %v1334 = vpack.c.b16 %v1236, %v1235
    %v1335 = vpack.c.b16 %v1238, %v1237
    %v1336 = vpack.c.b16 %v1240, %v1239
    %v1337 = vpack.c.b16 %v1242, %v1241
    %v1338 = vpack.c.b16 %v1244, %v1243
    %v1339 = vpack.c.b16 %v1246, %v1245
    %v1340 = vpack.c.b16 %v1248, %v1247
    %v1341 = vpack.c.b16 %v1250, %v1249
    %v1342 = vpack.c.b16 %v1252, %v1251
    %v1343 = vpack.c.b16 %v1254, %v1253
    %v1344 = vpack.c.b16 %v1256, %v1255
    %v1345 = vpack.c.b16 %v1258, %v1257
    %v1346 = vpack.c.b16 %v1260, %v1259
    %v1347 = vpack.c.b16 %v1262, %v1261
    %v1348 = vpack.c.b16 %v1264, %v1263
    %v1349 = vpack.c.b16 %v1266, %v1265
    %v1350 = vpack.c.b16 %v1268, %v1267
    %v1351 = vpack.c.b16 %v1270, %v1269
    %v1352 = vpack.c.b16 %v1272, %v1271
    %v1353 = vpack.c.b16 %v1274, %v1273
    %v1354 = vpack.c.b16 %v1276, %v1275
    %v1355 = vpack.c.b16 %v1278, %v1277
    %v1356 = vpack.c.b16 %v1280, %v1279
    %v1357 = vpack.c.b16 %v1282, %v1281
    %v1358 = vpack.c.b16 %v1284, %v1283
    %v1359 = vpack.c.b16 %v1286, %v1285
    %v1360 = vpack.c.b16 %v1288, %v1287
    %v1361 = vpack.c.b16 %v1290, %v1289
    %v1362 = vpack.c.b16 %v1292, %v1291
    %v1363 = vpack.c.b16 %v1294, %v1293
    %v1364 = vpack.c.b16 %v1296, %v1295
    %v1365 = vpack.c.b16 %v1298, %v1297
    %v1366 = vpack.c.b16 %v1300, %v1299
    %v1367 = vpack.c.b16 %v1302, %v1301
    %v1368 = vpack.c.b16 %v1304, %v1303
    %1433 = vmatprep.subr.bf16.mxu0 0
    %1434 = vmatpush1.bf16.msra.mxu0 %v1312
    %1435 = vmatprep.subr.bf16.mxu0 0
    %1436 = vmatpush1.bf16.msra.mxu0 %v1311
    %1437 = vmatprep.subr.bf16.mxu0 0
    %1438 = vmatpush1.bf16.msra.mxu0 %v1310
    %1439 = vmatprep.subr.bf16.mxu0 0
    %1440 = vmatpush1.bf16.msra.mxu0 %v1309
    %1441 = vmatprep.subr.bf16.mxu0 0
    %1442 = vmatpush1.bf16.msra.mxu0 %v1308
    %1443 = vmatprep.subr.bf16.mxu0 0
    %1444 = vmatpush1.bf16.msra.mxu0 %v1307
    %1445 = vmatprep.subr.bf16.mxu0 0
    %1446 = vmatpush1.bf16.msra.mxu0 %v1306
    %1447 = vmatprep.subr.bf16.mxu0 0
    %1448 = vmatpush1.bf16.msra.mxu0 %v1305
    %1449 = vmatprep.subr.bf16.mxu0 0
    %1450 = vmatpush2.bf16.msra.mxu0 %v1320
    %1451 = vmatprep.subr.bf16.mxu0 0
    %1452 = vmatpush2.bf16.msra.mxu0 %v1319
    %1453 = vmatprep.subr.bf16.mxu0 0
    %1454 = vmatpush2.bf16.msra.mxu0 %v1318
    %1455 = vmatprep.subr.bf16.mxu0 0
    %1456 = vmatpush2.bf16.msra.mxu0 %v1317
    %1457 = vmatprep.subr.bf16.mxu0 0
    %1458 = vmatpush2.bf16.msra.mxu0 %v1316
    %1459 = vmatprep.subr.bf16.mxu0 0
    %1460 = vmatpush2.bf16.msra.mxu0 %v1315
    %1461 = vmatprep.subr.bf16.mxu0 0
    %1462 = vmatpush2.bf16.msra.mxu0 %v1314
    %1463 = vmatprep.subr.bf16.mxu0 0
    %1464 = vmatpush2.bf16.msra.mxu0 %v1313
    %1465 = vmatprep.mubr.bf16.mxu0 %v1036
    %1466 = vmatmul.mubr.bf16.gmra.mxu0 %v1035
    %v1467 = vpop.f32.mrf.mxu0
    %v1468 = vadd.f32 %v1047, %v1467
    %v1469 = vpop.f32.mrf.mxu0
    %v1470 = vpop.f32.mrf.mxu0
    %v1471 = vadd.f32 %v1047, %v1470
    %v1472 = vpop.f32.mrf.mxu0
    %1473 = vdwg.mxu0
    %1474 = vmatprep.subr.bf16.mxu0 0
    %1475 = vmatpush1.bf16.msra.mxu0 %v1328
    %1476 = vmatprep.subr.bf16.mxu0 0
    %1477 = vmatpush1.bf16.msra.mxu0 %v1327
    %1478 = vmatprep.subr.bf16.mxu0 0
    %1479 = vmatpush1.bf16.msra.mxu0 %v1326
    %1480 = vmatprep.subr.bf16.mxu0 0
    %1481 = vmatpush1.bf16.msra.mxu0 %v1325
    %1482 = vmatprep.subr.bf16.mxu0 0
    %1483 = vmatpush1.bf16.msra.mxu0 %v1324
    %1484 = vmatprep.subr.bf16.mxu0 0
    %1485 = vmatpush1.bf16.msra.mxu0 %v1323
    %1486 = vmatprep.subr.bf16.mxu0 0
    %1487 = vmatpush1.bf16.msra.mxu0 %v1322
    %1488 = vmatprep.subr.bf16.mxu0 0
    %1489 = vmatpush1.bf16.msra.mxu0 %v1321
    %1490 = vmatprep.subr.bf16.mxu0 0
    %1491 = vmatpush2.bf16.msra.mxu0 %v1336
    %1492 = vmatprep.subr.bf16.mxu0 0
    %1493 = vmatpush2.bf16.msra.mxu0 %v1335
    %1494 = vmatprep.subr.bf16.mxu0 0
    %1495 = vmatpush2.bf16.msra.mxu0 %v1334
    %1496 = vmatprep.subr.bf16.mxu0 0
    %1497 = vmatpush2.bf16.msra.mxu0 %v1333
    %1498 = vmatprep.subr.bf16.mxu0 0
    %1499 = vmatpush2.bf16.msra.mxu0 %v1332
    %1500 = vmatprep.subr.bf16.mxu0 0
    %1501 = vmatpush2.bf16.msra.mxu0 %v1331
    %1502 = vmatprep.subr.bf16.mxu0 0
    %1503 = vmatpush2.bf16.msra.mxu0 %v1330
    %1504 = vmatprep.subr.bf16.mxu0 0
    %1505 = vmatpush2.bf16.msra.mxu0 %v1329
    %1506 = vmatprep.mubr.bf16.mxu0 %v1038
    %1507 = vmatmul.mubr.bf16.gmra.mxu0 %v1037
    %v1508 = vpop.f32.mrf.mxu0
    %v1509 = vadd.f32 %v1468, %v1508
    %v1510 = vpop.f32.mrf.mxu0
    %v1511 = vpop.f32.mrf.mxu0
    %v1512 = vadd.f32 %v1471, %v1511
    %v1513 = vpop.f32.mrf.mxu0
    %1514 = vdwg.mxu0
    %1515 = vmatprep.subr.bf16.mxu0 0
    %1516 = vmatpush1.bf16.msra.mxu0 %v1344
    %1517 = vmatprep.subr.bf16.mxu0 0
    %1518 = vmatpush1.bf16.msra.mxu0 %v1343
    %1519 = vmatprep.subr.bf16.mxu0 0
    %1520 = vmatpush1.bf16.msra.mxu0 %v1342
    %1521 = vmatprep.subr.bf16.mxu0 0
    %1522 = vmatpush1.bf16.msra.mxu0 %v1341
    %1523 = vmatprep.subr.bf16.mxu0 0
    %1524 = vmatpush1.bf16.msra.mxu0 %v1340
    %1525 = vmatprep.subr.bf16.mxu0 0
    %1526 = vmatpush1.bf16.msra.mxu0 %v1339
    %1527 = vmatprep.subr.bf16.mxu0 0
    %1528 = vmatpush1.bf16.msra.mxu0 %v1338
    %1529 = vmatprep.subr.bf16.mxu0 0
    %1530 = vmatpush1.bf16.msra.mxu0 %v1337
    %1531 = vmatprep.subr.bf16.mxu0 0
    %1532 = vmatpush2.bf16.msra.mxu0 %v1352
    %1533 = vmatprep.subr.bf16.mxu0 0
    %1534 = vmatpush2.bf16.msra.mxu0 %v1351
    %1535 = vmatprep.subr.bf16.mxu0 0
    %1536 = vmatpush2.bf16.msra.mxu0 %v1350
    %1537 = vmatprep.subr.bf16.mxu0 0
    %1538 = vmatpush2.bf16.msra.mxu0 %v1349
    %1539 = vmatprep.subr.bf16.mxu0 0
    %1540 = vmatpush2.bf16.msra.mxu0 %v1348
    %1541 = vmatprep.subr.bf16.mxu0 0
    %1542 = vmatpush2.bf16.msra.mxu0 %v1347
    %1543 = vmatprep.subr.bf16.mxu0 0
    %1544 = vmatpush2.bf16.msra.mxu0 %v1346
    %1545 = vmatprep.subr.bf16.mxu0 0
    %1546 = vmatpush2.bf16.msra.mxu0 %v1345
    %1547 = vmatprep.mubr.bf16.mxu0 %v1040
    %1548 = vmatmul.mubr.bf16.gmra.mxu0 %v1039
    %v1549 = vpop.f32.mrf.mxu0
    %v1550 = vadd.f32 %v1509, %v1549
    %v1551 = vpop.f32.mrf.mxu0
    %v1552 = vpop.f32.mrf.mxu0
    %v1553 = vadd.f32 %v1512, %v1552
    %v1554 = vpop.f32.mrf.mxu0
    %1555 = vdwg.mxu0
    %1556 = vmatprep.subr.bf16.mxu0 0
    %1557 = vmatpush1.bf16.msra.mxu0 %v1360
    %1558 = vmatprep.subr.bf16.mxu0 0
    %1559 = vmatpush1.bf16.msra.mxu0 %v1359
    %1560 = vmatprep.subr.bf16.mxu0 0
    %1561 = vmatpush1.bf16.msra.mxu0 %v1358
    %1562 = vmatprep.subr.bf16.mxu0 0
    %1563 = vmatpush1.bf16.msra.mxu0 %v1357
    %1564 = vmatprep.subr.bf16.mxu0 0
    %1565 = vmatpush1.bf16.msra.mxu0 %v1356
    %1566 = vmatprep.subr.bf16.mxu0 0
    %1567 = vmatpush1.bf16.msra.mxu0 %v1355
    %1568 = vmatprep.subr.bf16.mxu0 0
    %1569 = vmatpush1.bf16.msra.mxu0 %v1354
    %1570 = vmatprep.subr.bf16.mxu0 0
    %1571 = vmatpush1.bf16.msra.mxu0 %v1353
    %1572 = vmatprep.subr.bf16.mxu0 0
    %1573 = vmatpush2.bf16.msra.mxu0 %v1368
    %1574 = vmatprep.subr.bf16.mxu0 0
    %1575 = vmatpush2.bf16.msra.mxu0 %v1367
    %1576 = vmatprep.subr.bf16.mxu0 0
    %1577 = vmatpush2.bf16.msra.mxu0 %v1366
    %1578 = vmatprep.subr.bf16.mxu0 0
    %1579 = vmatpush2.bf16.msra.mxu0 %v1365
    %1580 = vmatprep.subr.bf16.mxu0 0
    %1581 = vmatpush2.bf16.msra.mxu0 %v1364
    %1582 = vmatprep.subr.bf16.mxu0 0
    %1583 = vmatpush2.bf16.msra.mxu0 %v1363
    %1584 = vmatprep.subr.bf16.mxu0 0
    %1585 = vmatpush2.bf16.msra.mxu0 %v1362
    %1586 = vmatprep.subr.bf16.mxu0 0
    %1587 = vmatpush2.bf16.msra.mxu0 %v1361
    %1588 = vmatprep.mubr.bf16.mxu0 %v1042
    %1589 = vmatmul.mubr.bf16.gmra.mxu0 %v1041
    %v1590 = vpop.f32.mrf.mxu0
    %v1591 = vadd.f32 %v1550, %v1590
    %v1592 = vpop.f32.mrf.mxu0
    %v1593 = vpop.f32.mrf.mxu0
    %v1594 = vadd.f32 %v1553, %v1593
    %v1595 = vpop.f32.mrf.mxu0
    %1596 = vdwg.mxu0
    %v1597 = vmax.f32 %v1591, 0.0
    %v1598 = vmax.f32 %v1594, 0.0
    %v1599 = vpack.c.bf16 %v1598, %v1597
    %v1601 = vlaneseq
    %v1602 = vshrl.u32 %v1601, 7
    %v1603 = vsub.s32 0, %v1602
    %v1604 = vrot.slane %v348, %v1603
    %v1605 = vlaneseq
    %v1606 = vshrl.u32 %v1605, 7
    %v1607 = vsub.s32 1, %v1606
    %v1608 = vrot.slane %v348, %v1607
    %v1609 = vlaneseq
    %v1610 = vshrl.u32 %v1609, 7
    %v1611 = vsub.s32 2, %v1610
    %v1612 = vrot.slane %v348, %v1611
    %v1613 = vlaneseq
    %v1614 = vshrl.u32 %v1613, 7
    %v1615 = vsub.s32 3, %v1614
    %v1616 = vrot.slane %v348, %v1615
    %v1617 = vlaneseq
    %v1618 = vshrl.u32 %v1617, 7
    %v1619 = vsub.s32 4, %v1618
    %v1620 = vrot.slane %v348, %v1619
    %v1621 = vlaneseq
    %v1622 = vshrl.u32 %v1621, 7
    %v1623 = vsub.s32 5, %v1622
    %v1624 = vrot.slane %v348, %v1623
    %v1625 = vlaneseq
    %v1626 = vshrl.u32 %v1625, 7
    %v1627 = vsub.s32 6, %v1626
    %v1628 = vrot.slane %v348, %v1627
    %v1629 = vlaneseq
    %v1630 = vshrl.u32 %v1629, 7
    %v1631 = vsub.s32 7, %v1630
    %v1632 = vrot.slane %v348, %v1631
    %v1705 = vunpack.c.l.b16 %v284
    %v1706 = vunpack.c.h.b16 %v284
    %v1707 = vunpack.c.l.b16 %v285
    %v1708 = vunpack.c.h.b16 %v285
    %v1709 = vunpack.c.l.b16 %v286
    %v1710 = vunpack.c.h.b16 %v286
    %v1711 = vunpack.c.l.b16 %v287
    %v1712 = vunpack.c.h.b16 %v287
    %v1713 = vunpack.c.l.b16 %v288
    %v1714 = vunpack.c.h.b16 %v288
    %v1715 = vunpack.c.l.b16 %v289
    %v1716 = vunpack.c.h.b16 %v289
    %v1717 = vunpack.c.l.b16 %v290
    %v1718 = vunpack.c.h.b16 %v290
    %v1719 = vunpack.c.l.b16 %v291
    %v1720 = vunpack.c.h.b16 %v291
    %v1721 = vunpack.c.l.b16 %v292
    %v1722 = vunpack.c.h.b16 %v292
    %v1723 = vunpack.c.l.b16 %v293
    %v1724 = vunpack.c.h.b16 %v293
    %v1725 = vunpack.c.l.b16 %v294
    %v1726 = vunpack.c.h.b16 %v294
    %v1727 = vunpack.c.l.b16 %v295
    %v1728 = vunpack.c.h.b16 %v295
    %v1729 = vunpack.c.l.b16 %v296
    %v1730 = vunpack.c.h.b16 %v296
    %v1731 = vunpack.c.l.b16 %v297
    %v1732 = vunpack.c.h.b16 %v297
    %v1733 = vunpack.c.l.b16 %v298
    %v1734 = vunpack.c.h.b16 %v298
    %v1735 = vunpack.c.l.b16 %v299
    %v1736 = vunpack.c.h.b16 %v299
    %v1737 = vunpack.c.l.b16 %v300
    %v1738 = vunpack.c.h.b16 %v300
    %v1739 = vunpack.c.l.b16 %v301
    %v1740 = vunpack.c.h.b16 %v301
    %v1741 = vunpack.c.l.b16 %v302
    %v1742 = vunpack.c.h.b16 %v302
    %v1743 = vunpack.c.l.b16 %v303
    %v1744 = vunpack.c.h.b16 %v303
    %v1745 = vunpack.c.l.b16 %v304
    %v1746 = vunpack.c.h.b16 %v304
    %v1747 = vunpack.c.l.b16 %v305
    %v1748 = vunpack.c.h.b16 %v305
    %v1749 = vunpack.c.l.b16 %v306
    %v1750 = vunpack.c.h.b16 %v306
    %v1751 = vunpack.c.l.b16 %v307
    %v1752 = vunpack.c.h.b16 %v307
    %v1753 = vunpack.c.l.b16 %v308
    %v1754 = vunpack.c.h.b16 %v308
    %v1755 = vunpack.c.l.b16 %v309
    %v1756 = vunpack.c.h.b16 %v309
    %v1757 = vunpack.c.l.b16 %v310
    %v1758 = vunpack.c.h.b16 %v310
    %v1759 = vunpack.c.l.b16 %v311
    %v1760 = vunpack.c.h.b16 %v311
    %v1761 = vunpack.c.l.b16 %v312
    %v1762 = vunpack.c.h.b16 %v312
    %v1763 = vunpack.c.l.b16 %v313
    %v1764 = vunpack.c.h.b16 %v313
    %v1765 = vunpack.c.l.b16 %v314
    %v1766 = vunpack.c.h.b16 %v314
    %v1767 = vunpack.c.l.b16 %v315
    %v1768 = vunpack.c.h.b16 %v315
    %v1769 = vunpack.c.l.b16 %v316
    %v1770 = vunpack.c.h.b16 %v316
    %v1771 = vunpack.c.l.b16 %v317
    %v1772 = vunpack.c.h.b16 %v317
    %v1773 = vunpack.c.l.b16 %v318
    %v1774 = vunpack.c.h.b16 %v318
    %v1775 = vunpack.c.l.b16 %v319
    %v1776 = vunpack.c.h.b16 %v319
    %v1777 = vunpack.c.l.b16 %v320
    %v1778 = vunpack.c.h.b16 %v320
    %v1779 = vunpack.c.l.b16 %v321
    %v1780 = vunpack.c.h.b16 %v321
    %v1781 = vunpack.c.l.b16 %v322
    %v1782 = vunpack.c.h.b16 %v322
    %v1783 = vunpack.c.l.b16 %v323
    %v1784 = vunpack.c.h.b16 %v323
    %v1785 = vunpack.c.l.b16 %v324
    %v1786 = vunpack.c.h.b16 %v324
    %v1787 = vunpack.c.l.b16 %v325
    %v1788 = vunpack.c.h.b16 %v325
    %v1789 = vunpack.c.l.b16 %v326
    %v1790 = vunpack.c.h.b16 %v326
    %v1791 = vunpack.c.l.b16 %v327
    %v1792 = vunpack.c.h.b16 %v327
    %v1793 = vunpack.c.l.b16 %v328
    %v1794 = vunpack.c.h.b16 %v328
    %v1795 = vunpack.c.l.b16 %v329
    %v1796 = vunpack.c.h.b16 %v329
    %v1797 = vunpack.c.l.b16 %v330
    %v1798 = vunpack.c.h.b16 %v330
    %v1799 = vunpack.c.l.b16 %v331
    %v1800 = vunpack.c.h.b16 %v331
    %v1801 = vunpack.c.l.b16 %v332
    %v1802 = vunpack.c.h.b16 %v332
    %v1803 = vunpack.c.l.b16 %v333
    %v1804 = vunpack.c.h.b16 %v333
    %v1805 = vunpack.c.l.b16 %v334
    %v1806 = vunpack.c.h.b16 %v334
    %v1807 = vunpack.c.l.b16 %v335
    %v1808 = vunpack.c.h.b16 %v335
    %v1809 = vunpack.c.l.b16 %v336
    %v1810 = vunpack.c.h.b16 %v336
    %v1811 = vunpack.c.l.b16 %v337
    %v1812 = vunpack.c.h.b16 %v337
    %v1813 = vunpack.c.l.b16 %v338
    %v1814 = vunpack.c.h.b16 %v338
    %v1815 = vunpack.c.l.b16 %v339
    %v1816 = vunpack.c.h.b16 %v339
    %v1817 = vunpack.c.l.b16 %v340
    %v1818 = vunpack.c.h.b16 %v340
    %v1819 = vunpack.c.l.b16 %v341
    %v1820 = vunpack.c.h.b16 %v341
    %v1821 = vunpack.c.l.b16 %v342
    %v1822 = vunpack.c.h.b16 %v342
    %v1823 = vunpack.c.l.b16 %v343
    %v1824 = vunpack.c.h.b16 %v343
    %v1825 = vunpack.c.l.b16 %v344
    %v1826 = vunpack.c.h.b16 %v344
    %v1827 = vunpack.c.l.b16 %v345
    %v1828 = vunpack.c.h.b16 %v345
    %v1829 = vunpack.c.l.b16 %v346
    %v1830 = vunpack.c.h.b16 %v346
    %v1831 = vunpack.c.l.b16 %v347
    %v1832 = vunpack.c.h.b16 %v347
    %v1833 = vpack.c.b16 %v1713, %v1705
    %v1834 = vpack.c.b16 %v1714, %v1706
    %v1835 = vpack.c.b16 %v1715, %v1707
    %v1836 = vpack.c.b16 %v1716, %v1708
    %v1837 = vpack.c.b16 %v1717, %v1709
    %v1838 = vpack.c.b16 %v1718, %v1710
    %v1839 = vpack.c.b16 %v1719, %v1711
    %v1840 = vpack.c.b16 %v1720, %v1712
    %v1841 = vpack.c.b16 %v1729, %v1721
    %v1842 = vpack.c.b16 %v1730, %v1722
    %v1843 = vpack.c.b16 %v1731, %v1723
    %v1844 = vpack.c.b16 %v1732, %v1724
    %v1845 = vpack.c.b16 %v1733, %v1725
    %v1846 = vpack.c.b16 %v1734, %v1726
    %v1847 = vpack.c.b16 %v1735, %v1727
    %v1848 = vpack.c.b16 %v1736, %v1728
    %v1849 = vpack.c.b16 %v1745, %v1737
    %v1850 = vpack.c.b16 %v1746, %v1738
    %v1851 = vpack.c.b16 %v1747, %v1739
    %v1852 = vpack.c.b16 %v1748, %v1740
    %v1853 = vpack.c.b16 %v1749, %v1741
    %v1854 = vpack.c.b16 %v1750, %v1742
    %v1855 = vpack.c.b16 %v1751, %v1743
    %v1856 = vpack.c.b16 %v1752, %v1744
    %v1857 = vpack.c.b16 %v1761, %v1753
    %v1858 = vpack.c.b16 %v1762, %v1754
    %v1859 = vpack.c.b16 %v1763, %v1755
    %v1860 = vpack.c.b16 %v1764, %v1756
    %v1861 = vpack.c.b16 %v1765, %v1757
    %v1862 = vpack.c.b16 %v1766, %v1758
    %v1863 = vpack.c.b16 %v1767, %v1759
    %v1864 = vpack.c.b16 %v1768, %v1760
    %v1865 = vpack.c.b16 %v1777, %v1769
    %v1866 = vpack.c.b16 %v1778, %v1770
    %v1867 = vpack.c.b16 %v1779, %v1771
    %v1868 = vpack.c.b16 %v1780, %v1772
    %v1869 = vpack.c.b16 %v1781, %v1773
    %v1870 = vpack.c.b16 %v1782, %v1774
    %v1871 = vpack.c.b16 %v1783, %v1775
    %v1872 = vpack.c.b16 %v1784, %v1776
    %v1873 = vpack.c.b16 %v1793, %v1785
    %v1874 = vpack.c.b16 %v1794, %v1786
    %v1875 = vpack.c.b16 %v1795, %v1787
    %v1876 = vpack.c.b16 %v1796, %v1788
    %v1877 = vpack.c.b16 %v1797, %v1789
    %v1878 = vpack.c.b16 %v1798, %v1790
    %v1879 = vpack.c.b16 %v1799, %v1791
    %v1880 = vpack.c.b16 %v1800, %v1792
    %v1881 = vpack.c.b16 %v1809, %v1801
    %v1882 = vpack.c.b16 %v1810, %v1802
    %v1883 = vpack.c.b16 %v1811, %v1803
    %v1884 = vpack.c.b16 %v1812, %v1804
    %v1885 = vpack.c.b16 %v1813, %v1805
    %v1886 = vpack.c.b16 %v1814, %v1806
    %v1887 = vpack.c.b16 %v1815, %v1807
    %v1888 = vpack.c.b16 %v1816, %v1808
    %v1889 = vpack.c.b16 %v1825, %v1817
    %v1890 = vpack.c.b16 %v1826, %v1818
    %v1891 = vpack.c.b16 %v1827, %v1819
    %v1892 = vpack.c.b16 %v1828, %v1820
    %v1893 = vpack.c.b16 %v1829, %v1821
    %v1894 = vpack.c.b16 %v1830, %v1822
    %v1895 = vpack.c.b16 %v1831, %v1823
    %v1896 = vpack.c.b16 %v1832, %v1824
    %1961 = vmatprep.subr.bf16.mxu0 %v1890
    %1962 = vmatpush1.bf16.msra.mxu0 %v1889
    %1963 = vmatprep.subr.bf16.mxu0 %v1882
    %1964 = vmatpush1.bf16.msra.mxu0 %v1881
    %1965 = vmatprep.subr.bf16.mxu0 %v1874
    %1966 = vmatpush1.bf16.msra.mxu0 %v1873
    %1967 = vmatprep.subr.bf16.mxu0 %v1866
    %1968 = vmatpush1.bf16.msra.mxu0 %v1865
    %1969 = vmatprep.subr.bf16.mxu0 %v1858
    %1970 = vmatpush1.bf16.msra.mxu0 %v1857
    %1971 = vmatprep.subr.bf16.mxu0 %v1850
    %1972 = vmatpush1.bf16.msra.mxu0 %v1849
    %1973 = vmatprep.subr.bf16.mxu0 %v1842
    %1974 = vmatpush1.bf16.msra.mxu0 %v1841
    %1975 = vmatprep.subr.bf16.mxu0 %v1834
    %1976 = vmatpush1.bf16.msra.mxu0 %v1833
    %1977 = vmatprep.subr.bf16.mxu0 0
    %1978 = vmatpush2.bf16.msra.mxu0 0
    %1979 = vmatprep.subr.bf16.mxu0 0
    %1980 = vmatpush2.bf16.msra.mxu0 0
    %1981 = vmatprep.subr.bf16.mxu0 0
    %1982 = vmatpush2.bf16.msra.mxu0 0
    %1983 = vmatprep.subr.bf16.mxu0 0
    %1984 = vmatpush2.bf16.msra.mxu0 0
    %1985 = vmatprep.subr.bf16.mxu0 0
    %1986 = vmatpush2.bf16.msra.mxu0 0
    %1987 = vmatprep.subr.bf16.mxu0 0
    %1988 = vmatpush2.bf16.msra.mxu0 0
    %1989 = vmatprep.subr.bf16.mxu0 0
    %1990 = vmatpush2.bf16.msra.mxu0 0
    %1991 = vmatprep.subr.bf16.mxu0 0
    %1992 = vmatpush2.bf16.msra.mxu0 0
    %1993 = vmatprep.mubr.bf16.mxu0 0
    %1994 = vmatmul.mubr.bf16.gmra.mxu0 %v1599
    %v1995 = vpop.f32.mrf.mxu0
    %v1996 = vadd.f32 %v1604, %v1995
    %v1997 = vpop.f32.mrf.mxu0
    %v1998 = vadd.f32 %v1608, %v1997
    %v1999 = vpop.f32.mrf.mxu0
    %v2000 = vadd.f32 %v1604, %v1999
    %v2001 = vpop.f32.mrf.mxu0
    %v2002 = vadd.f32 %v1608, %v2001
    %2003 = vdwg.mxu0
    %2004 = vmatprep.subr.bf16.mxu0 %v1892
    %2005 = vmatpush1.bf16.msra.mxu0 %v1891
    %2006 = vmatprep.subr.bf16.mxu0 %v1884
    %2007 = vmatpush1.bf16.msra.mxu0 %v1883
    %2008 = vmatprep.subr.bf16.mxu0 %v1876
    %2009 = vmatpush1.bf16.msra.mxu0 %v1875
    %2010 = vmatprep.subr.bf16.mxu0 %v1868
    %2011 = vmatpush1.bf16.msra.mxu0 %v1867
    %2012 = vmatprep.subr.bf16.mxu0 %v1860
    %2013 = vmatpush1.bf16.msra.mxu0 %v1859
    %2014 = vmatprep.subr.bf16.mxu0 %v1852
    %2015 = vmatpush1.bf16.msra.mxu0 %v1851
    %2016 = vmatprep.subr.bf16.mxu0 %v1844
    %2017 = vmatpush1.bf16.msra.mxu0 %v1843
    %2018 = vmatprep.subr.bf16.mxu0 %v1836
    %2019 = vmatpush1.bf16.msra.mxu0 %v1835
    %2020 = vmatprep.subr.bf16.mxu0 0
    %2021 = vmatpush2.bf16.msra.mxu0 0
    %2022 = vmatprep.subr.bf16.mxu0 0
    %2023 = vmatpush2.bf16.msra.mxu0 0
    %2024 = vmatprep.subr.bf16.mxu0 0
    %2025 = vmatpush2.bf16.msra.mxu0 0
    %2026 = vmatprep.subr.bf16.mxu0 0
    %2027 = vmatpush2.bf16.msra.mxu0 0
    %2028 = vmatprep.subr.bf16.mxu0 0
    %2029 = vmatpush2.bf16.msra.mxu0 0
    %2030 = vmatprep.subr.bf16.mxu0 0
    %2031 = vmatpush2.bf16.msra.mxu0 0
    %2032 = vmatprep.subr.bf16.mxu0 0
    %2033 = vmatpush2.bf16.msra.mxu0 0
    %2034 = vmatprep.subr.bf16.mxu0 0
    %2035 = vmatpush2.bf16.msra.mxu0 0
    %2036 = vmatprep.mubr.bf16.mxu0 0
    %2037 = vmatmul.mubr.bf16.gmra.mxu0 %v1599
    %v2038 = vpop.f32.mrf.mxu0
    %v2039 = vadd.f32 %v1612, %v2038
    %v2040 = vpop.f32.mrf.mxu0
    %v2041 = vadd.f32 %v1616, %v2040
    %v2042 = vpop.f32.mrf.mxu0
    %v2043 = vadd.f32 %v1612, %v2042
    %v2044 = vpop.f32.mrf.mxu0
    %v2045 = vadd.f32 %v1616, %v2044
    %2046 = vdwg.mxu0
    %2047 = vmatprep.subr.bf16.mxu0 %v1894
    %2048 = vmatpush1.bf16.msra.mxu0 %v1893
    %2049 = vmatprep.subr.bf16.mxu0 %v1886
    %2050 = vmatpush1.bf16.msra.mxu0 %v1885
    %2051 = vmatprep.subr.bf16.mxu0 %v1878
    %2052 = vmatpush1.bf16.msra.mxu0 %v1877
    %2053 = vmatprep.subr.bf16.mxu0 %v1870
    %2054 = vmatpush1.bf16.msra.mxu0 %v1869
    %2055 = vmatprep.subr.bf16.mxu0 %v1862
    %2056 = vmatpush1.bf16.msra.mxu0 %v1861
    %2057 = vmatprep.subr.bf16.mxu0 %v1854
    %2058 = vmatpush1.bf16.msra.mxu0 %v1853
    %2059 = vmatprep.subr.bf16.mxu0 %v1846
    %2060 = vmatpush1.bf16.msra.mxu0 %v1845
    %2061 = vmatprep.subr.bf16.mxu0 %v1838
    %2062 = vmatpush1.bf16.msra.mxu0 %v1837
    %2063 = vmatprep.subr.bf16.mxu0 0
    %2064 = vmatpush2.bf16.msra.mxu0 0
    %2065 = vmatprep.subr.bf16.mxu0 0
    %2066 = vmatpush2.bf16.msra.mxu0 0
    %2067 = vmatprep.subr.bf16.mxu0 0
    %2068 = vmatpush2.bf16.msra.mxu0 0
    %2069 = vmatprep.subr.bf16.mxu0 0
    %2070 = vmatpush2.bf16.msra.mxu0 0
    %2071 = vmatprep.subr.bf16.mxu0 0
    %2072 = vmatpush2.bf16.msra.mxu0 0
    %2073 = vmatprep.subr.bf16.mxu0 0
    %2074 = vmatpush2.bf16.msra.mxu0 0
    %2075 = vmatprep.subr.bf16.mxu0 0
    %2076 = vmatpush2.bf16.msra.mxu0 0
    %2077 = vmatprep.subr.bf16.mxu0 0
    %2078 = vmatpush2.bf16.msra.mxu0 0
    %2079 = vmatprep.mubr.bf16.mxu0 0
    %2080 = vmatmul.mubr.bf16.gmra.mxu0 %v1599
    %v2081 = vpop.f32.mrf.mxu0
    %v2082 = vadd.f32 %v1620, %v2081
    %v2083 = vpop.f32.mrf.mxu0
    %v2084 = vadd.f32 %v1624, %v2083
    %v2085 = vpop.f32.mrf.mxu0
    %v2086 = vadd.f32 %v1620, %v2085
    %v2087 = vpop.f32.mrf.mxu0
    %v2088 = vadd.f32 %v1624, %v2087
    %2089 = vdwg.mxu0
    %2090 = vmatprep.subr.bf16.mxu0 %v1896
    %2091 = vmatpush1.bf16.msra.mxu0 %v1895
    %2092 = vmatprep.subr.bf16.mxu0 %v1888
    %2093 = vmatpush1.bf16.msra.mxu0 %v1887
    %2094 = vmatprep.subr.bf16.mxu0 %v1880
    %2095 = vmatpush1.bf16.msra.mxu0 %v1879
    %2096 = vmatprep.subr.bf16.mxu0 %v1872
    %2097 = vmatpush1.bf16.msra.mxu0 %v1871
    %2098 = vmatprep.subr.bf16.mxu0 %v1864
    %2099 = vmatpush1.bf16.msra.mxu0 %v1863
    %2100 = vmatprep.subr.bf16.mxu0 %v1856
    %2101 = vmatpush1.bf16.msra.mxu0 %v1855
    %2102 = vmatprep.subr.bf16.mxu0 %v1848
    %2103 = vmatpush1.bf16.msra.mxu0 %v1847
    %2104 = vmatprep.subr.bf16.mxu0 %v1840
    %2105 = vmatpush1.bf16.msra.mxu0 %v1839
    %2106 = vmatprep.subr.bf16.mxu0 0
    %2107 = vmatpush2.bf16.msra.mxu0 0
    %2108 = vmatprep.subr.bf16.mxu0 0
    %2109 = vmatpush2.bf16.msra.mxu0 0
    %2110 = vmatprep.subr.bf16.mxu0 0
    %2111 = vmatpush2.bf16.msra.mxu0 0
    %2112 = vmatprep.subr.bf16.mxu0 0
    %2113 = vmatpush2.bf16.msra.mxu0 0
    %2114 = vmatprep.subr.bf16.mxu0 0
    %2115 = vmatpush2.bf16.msra.mxu0 0
    %2116 = vmatprep.subr.bf16.mxu0 0
    %2117 = vmatpush2.bf16.msra.mxu0 0
    %2118 = vmatprep.subr.bf16.mxu0 0
    %2119 = vmatpush2.bf16.msra.mxu0 0
    %2120 = vmatprep.subr.bf16.mxu0 0
    %2121 = vmatpush2.bf16.msra.mxu0 0
    %2122 = vmatprep.mubr.bf16.mxu0 0
    %2123 = vmatmul.mubr.bf16.gmra.mxu0 %v1599
    %v2124 = vpop.f32.mrf.mxu0
    %v2125 = vadd.f32 %v1628, %v2124
    %v2126 = vpop.f32.mrf.mxu0
    %v2127 = vadd.f32 %v1632, %v2126
    %v2128 = vpop.f32.mrf.mxu0
    %v2129 = vadd.f32 %v1628, %v2128
    %v2130 = vpop.f32.mrf.mxu0
    %v2131 = vadd.f32 %v1632, %v2130
    %2132 = vdwg.mxu0
    %v2133 = vmax.f32 %v1996, 0.0
    %v2134 = vmax.f32 %v1998, 0.0
    %v2135 = vmax.f32 %v2039, 0.0
    %v2136 = vmax.f32 %v2041, 0.0
    %v2137 = vmax.f32 %v2082, 0.0
    %v2138 = vmax.f32 %v2084, 0.0
    %v2139 = vmax.f32 %v2125, 0.0
    %v2140 = vmax.f32 %v2127, 0.0
    %v2141 = vmax.f32 %v2000, 0.0
    %v2142 = vmax.f32 %v2002, 0.0
    %v2143 = vmax.f32 %v2043, 0.0
    %v2144 = vmax.f32 %v2045, 0.0
    %v2145 = vmax.f32 %v2086, 0.0
    %v2146 = vmax.f32 %v2088, 0.0
    %v2147 = vmax.f32 %v2129, 0.0
    %v2148 = vmax.f32 %v2131, 0.0
    %v2149 = vpack.c.bf16 %v2141, %v2133
    %v2150 = vpack.c.bf16 %v2142, %v2134
    %v2151 = vpack.c.bf16 %v2143, %v2135
    %v2152 = vpack.c.bf16 %v2144, %v2136
    %v2153 = vpack.c.bf16 %v2145, %v2137
    %v2154 = vpack.c.bf16 %v2146, %v2138
    %v2155 = vpack.c.bf16 %v2147, %v2139
    %v2156 = vpack.c.bf16 %v2148, %v2140
    %v2158 = vlaneseq
    %v2159 = vshrl.u32 %v2158, 7
    %v2160 = vsub.s32 0, %v2159
    %v2161 = vrot.slane %v477, %v2160
    %v2291 = vunpack.c.l.b16 %v349
    %v2292 = vunpack.c.l.b16 %v350
    %v2293 = vunpack.c.l.b16 %v351
    %v2294 = vunpack.c.l.b16 %v352
    %v2295 = vunpack.c.l.b16 %v353
    %v2296 = vunpack.c.l.b16 %v354
    %v2297 = vunpack.c.l.b16 %v355
    %v2298 = vunpack.c.l.b16 %v356
    %v2299 = vunpack.c.l.b16 %v357
    %v2300 = vunpack.c.l.b16 %v358
    %v2301 = vunpack.c.l.b16 %v359
    %v2302 = vunpack.c.l.b16 %v360
    %v2303 = vunpack.c.l.b16 %v361
    %v2304 = vunpack.c.l.b16 %v362
    %v2305 = vunpack.c.l.b16 %v363
    %v2306 = vunpack.c.l.b16 %v364
    %v2307 = vunpack.c.l.b16 %v365
    %v2308 = vunpack.c.l.b16 %v366
    %v2309 = vunpack.c.l.b16 %v367
    %v2310 = vunpack.c.l.b16 %v368
    %v2311 = vunpack.c.l.b16 %v369
    %v2312 = vunpack.c.l.b16 %v370
    %v2313 = vunpack.c.l.b16 %v371
    %v2314 = vunpack.c.l.b16 %v372
    %v2315 = vunpack.c.l.b16 %v373
    %v2316 = vunpack.c.l.b16 %v374
    %v2317 = vunpack.c.l.b16 %v375
    %v2318 = vunpack.c.l.b16 %v376
    %v2319 = vunpack.c.l.b16 %v377
    %v2320 = vunpack.c.l.b16 %v378
    %v2321 = vunpack.c.l.b16 %v379
    %v2322 = vunpack.c.l.b16 %v380
    %v2323 = vunpack.c.l.b16 %v381
    %v2324 = vunpack.c.l.b16 %v382
    %v2325 = vunpack.c.l.b16 %v383
    %v2326 = vunpack.c.l.b16 %v384
    %v2327 = vunpack.c.l.b16 %v385
    %v2328 = vunpack.c.l.b16 %v386
    %v2329 = vunpack.c.l.b16 %v387
    %v2330 = vunpack.c.l.b16 %v388
    %v2331 = vunpack.c.l.b16 %v389
    %v2332 = vunpack.c.l.b16 %v390
    %v2333 = vunpack.c.l.b16 %v391
    %v2334 = vunpack.c.l.b16 %v392
    %v2335 = vunpack.c.l.b16 %v393
    %v2336 = vunpack.c.l.b16 %v394
    %v2337 = vunpack.c.l.b16 %v395
    %v2338 = vunpack.c.l.b16 %v396
    %v2339 = vunpack.c.l.b16 %v397
    %v2340 = vunpack.c.l.b16 %v398
    %v2341 = vunpack.c.l.b16 %v399
    %v2342 = vunpack.c.l.b16 %v400
    %v2343 = vunpack.c.l.b16 %v401
    %v2344 = vunpack.c.l.b16 %v402
    %v2345 = vunpack.c.l.b16 %v403
    %v2346 = vunpack.c.l.b16 %v404
    %v2347 = vunpack.c.l.b16 %v405
    %v2348 = vunpack.c.l.b16 %v406
    %v2349 = vunpack.c.l.b16 %v407
    %v2350 = vunpack.c.l.b16 %v408
    %v2351 = vunpack.c.l.b16 %v409
    %v2352 = vunpack.c.l.b16 %v410
    %v2353 = vunpack.c.l.b16 %v411
    %v2354 = vunpack.c.l.b16 %v412
    %v2355 = vunpack.c.l.b16 %v413
    %v2356 = vunpack.c.l.b16 %v414
    %v2357 = vunpack.c.l.b16 %v415
    %v2358 = vunpack.c.l.b16 %v416
    %v2359 = vunpack.c.l.b16 %v417
    %v2360 = vunpack.c.l.b16 %v418
    %v2361 = vunpack.c.l.b16 %v419
    %v2362 = vunpack.c.l.b16 %v420
    %v2363 = vunpack.c.l.b16 %v421
    %v2364 = vunpack.c.l.b16 %v422
    %v2365 = vunpack.c.l.b16 %v423
    %v2366 = vunpack.c.l.b16 %v424
    %v2367 = vunpack.c.l.b16 %v425
    %v2368 = vunpack.c.l.b16 %v426
    %v2369 = vunpack.c.l.b16 %v427
    %v2370 = vunpack.c.l.b16 %v428
    %v2371 = vunpack.c.l.b16 %v429
    %v2372 = vunpack.c.l.b16 %v430
    %v2373 = vunpack.c.l.b16 %v431
    %v2374 = vunpack.c.l.b16 %v432
    %v2375 = vunpack.c.l.b16 %v433
    %v2376 = vunpack.c.l.b16 %v434
    %v2377 = vunpack.c.l.b16 %v435
    %v2378 = vunpack.c.l.b16 %v436
    %v2379 = vunpack.c.l.b16 %v437
    %v2380 = vunpack.c.l.b16 %v438
    %v2381 = vunpack.c.l.b16 %v439
    %v2382 = vunpack.c.l.b16 %v440
    %v2383 = vunpack.c.l.b16 %v441
    %v2384 = vunpack.c.l.b16 %v442
    %v2385 = vunpack.c.l.b16 %v443
    %v2386 = vunpack.c.l.b16 %v444
    %v2387 = vunpack.c.l.b16 %v445
    %v2388 = vunpack.c.l.b16 %v446
    %v2389 = vunpack.c.l.b16 %v447
    %v2390 = vunpack.c.l.b16 %v448
    %v2391 = vunpack.c.l.b16 %v449
    %v2392 = vunpack.c.l.b16 %v450
    %v2393 = vunpack.c.l.b16 %v451
    %v2394 = vunpack.c.l.b16 %v452
    %v2395 = vunpack.c.l.b16 %v453
    %v2396 = vunpack.c.l.b16 %v454
    %v2397 = vunpack.c.l.b16 %v455
    %v2398 = vunpack.c.l.b16 %v456
    %v2399 = vunpack.c.l.b16 %v457
    %v2400 = vunpack.c.l.b16 %v458
    %v2401 = vunpack.c.l.b16 %v459
    %v2402 = vunpack.c.l.b16 %v460
    %v2403 = vunpack.c.l.b16 %v461
    %v2404 = vunpack.c.l.b16 %v462
    %v2405 = vunpack.c.l.b16 %v463
    %v2406 = vunpack.c.l.b16 %v464
    %v2407 = vunpack.c.l.b16 %v465
    %v2408 = vunpack.c.l.b16 %v466
    %v2409 = vunpack.c.l.b16 %v467
    %v2410 = vunpack.c.l.b16 %v468
    %v2411 = vunpack.c.l.b16 %v469
    %v2412 = vunpack.c.l.b16 %v470
    %v2413 = vunpack.c.l.b16 %v471
    %v2414 = vunpack.c.l.b16 %v472
    %v2415 = vunpack.c.l.b16 %v473
    %v2416 = vunpack.c.l.b16 %v474
    %v2417 = vunpack.c.l.b16 %v475
    %v2418 = vunpack.c.l.b16 %v476
    %v2419 = vpack.c.b16 %v2292, %v2291
    %v2420 = vpack.c.b16 %v2294, %v2293
    %v2421 = vpack.c.b16 %v2296, %v2295
    %v2422 = vpack.c.b16 %v2298, %v2297
    %v2423 = vpack.c.b16 %v2300, %v2299
    %v2424 = vpack.c.b16 %v2302, %v2301
    %v2425 = vpack.c.b16 %v2304, %v2303
    %v2426 = vpack.c.b16 %v2306, %v2305
    %v2427 = vpack.c.b16 %v2308, %v2307
    %v2428 = vpack.c.b16 %v2310, %v2309
    %v2429 = vpack.c.b16 %v2312, %v2311
    %v2430 = vpack.c.b16 %v2314, %v2313
    %v2431 = vpack.c.b16 %v2316, %v2315
    %v2432 = vpack.c.b16 %v2318, %v2317
    %v2433 = vpack.c.b16 %v2320, %v2319
    %v2434 = vpack.c.b16 %v2322, %v2321
    %v2435 = vpack.c.b16 %v2324, %v2323
    %v2436 = vpack.c.b16 %v2326, %v2325
    %v2437 = vpack.c.b16 %v2328, %v2327
    %v2438 = vpack.c.b16 %v2330, %v2329
    %v2439 = vpack.c.b16 %v2332, %v2331
    %v2440 = vpack.c.b16 %v2334, %v2333
    %v2441 = vpack.c.b16 %v2336, %v2335
    %v2442 = vpack.c.b16 %v2338, %v2337
    %v2443 = vpack.c.b16 %v2340, %v2339
    %v2444 = vpack.c.b16 %v2342, %v2341
    %v2445 = vpack.c.b16 %v2344, %v2343
    %v2446 = vpack.c.b16 %v2346, %v2345
    %v2447 = vpack.c.b16 %v2348, %v2347
    %v2448 = vpack.c.b16 %v2350, %v2349
    %v2449 = vpack.c.b16 %v2352, %v2351
    %v2450 = vpack.c.b16 %v2354, %v2353
    %v2451 = vpack.c.b16 %v2356, %v2355
    %v2452 = vpack.c.b16 %v2358, %v2357
    %v2453 = vpack.c.b16 %v2360, %v2359
    %v2454 = vpack.c.b16 %v2362, %v2361
    %v2455 = vpack.c.b16 %v2364, %v2363
    %v2456 = vpack.c.b16 %v2366, %v2365
    %v2457 = vpack.c.b16 %v2368, %v2367
    %v2458 = vpack.c.b16 %v2370, %v2369
    %v2459 = vpack.c.b16 %v2372, %v2371
    %v2460 = vpack.c.b16 %v2374, %v2373
    %v2461 = vpack.c.b16 %v2376, %v2375
    %v2462 = vpack.c.b16 %v2378, %v2377
    %v2463 = vpack.c.b16 %v2380, %v2379
    %v2464 = vpack.c.b16 %v2382, %v2381
    %v2465 = vpack.c.b16 %v2384, %v2383
    %v2466 = vpack.c.b16 %v2386, %v2385
    %v2467 = vpack.c.b16 %v2388, %v2387
    %v2468 = vpack.c.b16 %v2390, %v2389
    %v2469 = vpack.c.b16 %v2392, %v2391
    %v2470 = vpack.c.b16 %v2394, %v2393
    %v2471 = vpack.c.b16 %v2396, %v2395
    %v2472 = vpack.c.b16 %v2398, %v2397
    %v2473 = vpack.c.b16 %v2400, %v2399
    %v2474 = vpack.c.b16 %v2402, %v2401
    %v2475 = vpack.c.b16 %v2404, %v2403
    %v2476 = vpack.c.b16 %v2406, %v2405
    %v2477 = vpack.c.b16 %v2408, %v2407
    %v2478 = vpack.c.b16 %v2410, %v2409
    %v2479 = vpack.c.b16 %v2412, %v2411
    %v2480 = vpack.c.b16 %v2414, %v2413
    %v2481 = vpack.c.b16 %v2416, %v2415
    %v2482 = vpack.c.b16 %v2418, %v2417
    %2547 = vmatprep.subr.bf16.mxu0 0
    %2548 = vmatpush1.bf16.msra.mxu0 %v2426
    %2549 = vmatprep.subr.bf16.mxu0 0
    %2550 = vmatpush1.bf16.msra.mxu0 %v2425
    %2551 = vmatprep.subr.bf16.mxu0 0
    %2552 = vmatpush1.bf16.msra.mxu0 %v2424
    %2553 = vmatprep.subr.bf16.mxu0 0
    %2554 = vmatpush1.bf16.msra.mxu0 %v2423
    %2555 = vmatprep.subr.bf16.mxu0 0
    %2556 = vmatpush1.bf16.msra.mxu0 %v2422
    %2557 = vmatprep.subr.bf16.mxu0 0
    %2558 = vmatpush1.bf16.msra.mxu0 %v2421
    %2559 = vmatprep.subr.bf16.mxu0 0
    %2560 = vmatpush1.bf16.msra.mxu0 %v2420
    %2561 = vmatprep.subr.bf16.mxu0 0
    %2562 = vmatpush1.bf16.msra.mxu0 %v2419
    %2563 = vmatprep.subr.bf16.mxu0 0
    %2564 = vmatpush2.bf16.msra.mxu0 %v2434
    %2565 = vmatprep.subr.bf16.mxu0 0
    %2566 = vmatpush2.bf16.msra.mxu0 %v2433
    %2567 = vmatprep.subr.bf16.mxu0 0
    %2568 = vmatpush2.bf16.msra.mxu0 %v2432
    %2569 = vmatprep.subr.bf16.mxu0 0
    %2570 = vmatpush2.bf16.msra.mxu0 %v2431
    %2571 = vmatprep.subr.bf16.mxu0 0
    %2572 = vmatpush2.bf16.msra.mxu0 %v2430
    %2573 = vmatprep.subr.bf16.mxu0 0
    %2574 = vmatpush2.bf16.msra.mxu0 %v2429
    %2575 = vmatprep.subr.bf16.mxu0 0
    %2576 = vmatpush2.bf16.msra.mxu0 %v2428
    %2577 = vmatprep.subr.bf16.mxu0 0
    %2578 = vmatpush2.bf16.msra.mxu0 %v2427
    %2579 = vmatprep.mubr.bf16.mxu0 %v2150
    %2580 = vmatmul.mubr.bf16.gmra.mxu0 %v2149
    %v2581 = vpop.f32.mrf.mxu0
    %v2582 = vadd.f32 %v2161, %v2581
    %v2583 = vpop.f32.mrf.mxu0
    %v2584 = vpop.f32.mrf.mxu0
    %v2585 = vadd.f32 %v2161, %v2584
    %v2586 = vpop.f32.mrf.mxu0
    %2587 = vdwg.mxu0
    %2588 = vmatprep.subr.bf16.mxu0 0
    %2589 = vmatpush1.bf16.msra.mxu0 %v2442
    %2590 = vmatprep.subr.bf16.mxu0 0
    %2591 = vmatpush1.bf16.msra.mxu0 %v2441
    %2592 = vmatprep.subr.bf16.mxu0 0
    %2593 = vmatpush1.bf16.msra.mxu0 %v2440
    %2594 = vmatprep.subr.bf16.mxu0 0
    %2595 = vmatpush1.bf16.msra.mxu0 %v2439
    %2596 = vmatprep.subr.bf16.mxu0 0
    %2597 = vmatpush1.bf16.msra.mxu0 %v2438
    %2598 = vmatprep.subr.bf16.mxu0 0
    %2599 = vmatpush1.bf16.msra.mxu0 %v2437
    %2600 = vmatprep.subr.bf16.mxu0 0
    %2601 = vmatpush1.bf16.msra.mxu0 %v2436
    %2602 = vmatprep.subr.bf16.mxu0 0
    %2603 = vmatpush1.bf16.msra.mxu0 %v2435
    %2604 = vmatprep.subr.bf16.mxu0 0
    %2605 = vmatpush2.bf16.msra.mxu0 %v2450
    %2606 = vmatprep.subr.bf16.mxu0 0
    %2607 = vmatpush2.bf16.msra.mxu0 %v2449
    %2608 = vmatprep.subr.bf16.mxu0 0
    %2609 = vmatpush2.bf16.msra.mxu0 %v2448
    %2610 = vmatprep.subr.bf16.mxu0 0
    %2611 = vmatpush2.bf16.msra.mxu0 %v2447
    %2612 = vmatprep.subr.bf16.mxu0 0
    %2613 = vmatpush2.bf16.msra.mxu0 %v2446
    %2614 = vmatprep.subr.bf16.mxu0 0
    %2615 = vmatpush2.bf16.msra.mxu0 %v2445
    %2616 = vmatprep.subr.bf16.mxu0 0
    %2617 = vmatpush2.bf16.msra.mxu0 %v2444
    %2618 = vmatprep.subr.bf16.mxu0 0
    %2619 = vmatpush2.bf16.msra.mxu0 %v2443
    %2620 = vmatprep.mubr.bf16.mxu0 %v2152
    %2621 = vmatmul.mubr.bf16.gmra.mxu0 %v2151
    %v2622 = vpop.f32.mrf.mxu0
    %v2623 = vadd.f32 %v2582, %v2622
    %v2624 = vpop.f32.mrf.mxu0
    %v2625 = vpop.f32.mrf.mxu0
    %v2626 = vadd.f32 %v2585, %v2625
    %v2627 = vpop.f32.mrf.mxu0
    %2628 = vdwg.mxu0
    %2629 = vmatprep.subr.bf16.mxu0 0
    %2630 = vmatpush1.bf16.msra.mxu0 %v2458
    %2631 = vmatprep.subr.bf16.mxu0 0
    %2632 = vmatpush1.bf16.msra.mxu0 %v2457
    %2633 = vmatprep.subr.bf16.mxu0 0
    %2634 = vmatpush1.bf16.msra.mxu0 %v2456
    %2635 = vmatprep.subr.bf16.mxu0 0
    %2636 = vmatpush1.bf16.msra.mxu0 %v2455
    %2637 = vmatprep.subr.bf16.mxu0 0
    %2638 = vmatpush1.bf16.msra.mxu0 %v2454
    %2639 = vmatprep.subr.bf16.mxu0 0
    %2640 = vmatpush1.bf16.msra.mxu0 %v2453
    %2641 = vmatprep.subr.bf16.mxu0 0
    %2642 = vmatpush1.bf16.msra.mxu0 %v2452
    %2643 = vmatprep.subr.bf16.mxu0 0
    %2644 = vmatpush1.bf16.msra.mxu0 %v2451
    %2645 = vmatprep.subr.bf16.mxu0 0
    %2646 = vmatpush2.bf16.msra.mxu0 %v2466
    %2647 = vmatprep.subr.bf16.mxu0 0
    %2648 = vmatpush2.bf16.msra.mxu0 %v2465
    %2649 = vmatprep.subr.bf16.mxu0 0
    %2650 = vmatpush2.bf16.msra.mxu0 %v2464
    %2651 = vmatprep.subr.bf16.mxu0 0
    %2652 = vmatpush2.bf16.msra.mxu0 %v2463
    %2653 = vmatprep.subr.bf16.mxu0 0
    %2654 = vmatpush2.bf16.msra.mxu0 %v2462
    %2655 = vmatprep.subr.bf16.mxu0 0
    %2656 = vmatpush2.bf16.msra.mxu0 %v2461
    %2657 = vmatprep.subr.bf16.mxu0 0
    %2658 = vmatpush2.bf16.msra.mxu0 %v2460
    %2659 = vmatprep.subr.bf16.mxu0 0
    %2660 = vmatpush2.bf16.msra.mxu0 %v2459
    %2661 = vmatprep.mubr.bf16.mxu0 %v2154
    %2662 = vmatmul.mubr.bf16.gmra.mxu0 %v2153
    %v2663 = vpop.f32.mrf.mxu0
    %v2664 = vadd.f32 %v2623, %v2663
    %v2665 = vpop.f32.mrf.mxu0
    %v2666 = vpop.f32.mrf.mxu0
    %v2667 = vadd.f32 %v2626, %v2666
    %v2668 = vpop.f32.mrf.mxu0
    %2669 = vdwg.mxu0
    %2670 = vmatprep.subr.bf16.mxu0 0
    %2671 = vmatpush1.bf16.msra.mxu0 %v2474
    %2672 = vmatprep.subr.bf16.mxu0 0
    %2673 = vmatpush1.bf16.msra.mxu0 %v2473
    %2674 = vmatprep.subr.bf16.mxu0 0
    %2675 = vmatpush1.bf16.msra.mxu0 %v2472
    %2676 = vmatprep.subr.bf16.mxu0 0
    %2677 = vmatpush1.bf16.msra.mxu0 %v2471
    %2678 = vmatprep.subr.bf16.mxu0 0
    %2679 = vmatpush1.bf16.msra.mxu0 %v2470
    %2680 = vmatprep.subr.bf16.mxu0 0
    %2681 = vmatpush1.bf16.msra.mxu0 %v2469
    %2682 = vmatprep.subr.bf16.mxu0 0
    %2683 = vmatpush1.bf16.msra.mxu0 %v2468
    %2684 = vmatprep.subr.bf16.mxu0 0
    %2685 = vmatpush1.bf16.msra.mxu0 %v2467
    %2686 = vmatprep.subr.bf16.mxu0 0
    %2687 = vmatpush2.bf16.msra.mxu0 %v2482
    %2688 = vmatprep.subr.bf16.mxu0 0
    %2689 = vmatpush2.bf16.msra.mxu0 %v2481
    %2690 = vmatprep.subr.bf16.mxu0 0
    %2691 = vmatpush2.bf16.msra.mxu0 %v2480
    %2692 = vmatprep.subr.bf16.mxu0 0
    %2693 = vmatpush2.bf16.msra.mxu0 %v2479
    %2694 = vmatprep.subr.bf16.mxu0 0
    %2695 = vmatpush2.bf16.msra.mxu0 %v2478
    %2696 = vmatprep.subr.bf16.mxu0 0
    %2697 = vmatpush2.bf16.msra.mxu0 %v2477
    %2698 = vmatprep.subr.bf16.mxu0 0
    %2699 = vmatpush2.bf16.msra.mxu0 %v2476
    %2700 = vmatprep.subr.bf16.mxu0 0
    %2701 = vmatpush2.bf16.msra.mxu0 %v2475
    %2702 = vmatprep.mubr.bf16.mxu0 %v2156
    %2703 = vmatmul.mubr.bf16.gmra.mxu0 %v2155
    %v2704 = vpop.f32.mrf.mxu0
    %v2705 = vadd.f32 %v2664, %v2704
    %v2706 = vpop.f32.mrf.mxu0
    %v2707 = vpop.f32.mrf.mxu0
    %v2708 = vadd.f32 %v2667, %v2707
    %v2709 = vpop.f32.mrf.mxu0
    %2710 = vdwg.mxu0
    %v2711 = vxor.u32 %v2705, 2147483648
    %v2712 = vxor.u32 %v2708, 2147483648
    %v2713 = vmul.f32 %v2711, 1.442695
    %v2714 = vpow.pop %v2713
    %v2715 = vmul.f32 %v2712, 1.442695
    %v2716 = vpow.pop %v2715
    %v2717 = vadd.f32 %v2714, 1.0
    %v2718 = vadd.f32 %v2716, 1.0
    %v2719 = vrcp.pop %v2717
    %v2720 = vmul.f32 1.0, %v2719
    %v2721 = vrcp.pop %v2718
    %v2722 = vmul.f32 1.0, %v2721
    %2723 = vst [vmem:[%s9] sm:$0xff] %v2720
    %2724 = vst [vmem:[%s9 + $0x8] sm:$0xff] %v2722
    %2725 = vst [vmem:[%s10] sm:$0xff] %v1597
    %2726 = vst [vmem:[%s10 + $0x8] sm:$0xff] %v1598
    // Predicated region
    $region54: #{sae_forward.1} parent=1 // pred_check
      _
    $region55: #{sae_forward.1} parent=1 // pred_check_branch
      %2728 = sbr.rel (0) target = $region57
    $region56: #{sae_forward.1} parent=1 // pred_region
      _
    $region57: #{sae_forward.1} parent=1 // pred_fallthru
      _
    // Predicated region
    $region58: #{sae_forward.1} parent=1 // pred_check
      _
    $region59: #{sae_forward.1} parent=1 // pred_check_branch
      %2730 = sbr.rel (0) target = $region61
    $region60: #{sae_forward.1} parent=1 // pred_region
      _
    $region61: #{sae_forward.1} parent=1 // pred_fallthru
      _
    // Predicated region
    $region62: #{sae_forward.1} parent=1 // pred_check
      _
    $region63: #{sae_forward.1} parent=1 // pred_check_branch
      %2732 = sbr.rel (0) target = $region65
    $region64: #{sae_forward.1} parent=1 // pred_region
      _
    $region65: #{sae_forward.1} parent=1 // pred_fallthru
      _
    // Predicated region
    $region66: #{sae_forward.1} parent=1 // pred_check
      _
    $region67: #{sae_forward.1} parent=1 // pred_check_branch
      %2734 = sbr.rel (0) target = $region69
    $region68: #{sae_forward.1} parent=1 // pred_region
      _
    $region69: #{sae_forward.1} parent=1 // pred_fallthru
      _
    %2735 = vsyncpa [#allocation3], 1
    %2736 = vsyncpa [#allocation5], 1
    %2737 = vsyncpa [#allocation8], 1

</llo_original>
